<compile_context>
chip_gen: v5e
topology: v5e:2x2
jax: 0.10.0
libtpu: 0.0.40
codegen_flags: <defaults>
</compile_context>

<pallas_src>
import jax
import jax.numpy as jnp
from jax.experimental import pallas as pl
from jax.experimental.pallas import tpu as pltpu

B = 2              # batch
C_IN = 4           # num_inputs
L = 24             # sequence length (64*(L+1) == 1600, the LSTM input size)
L3 = L + 1         # length after conv3 (kernel 2, padding 1)
HIDDEN = 32        # args.hidden_size
NUM_OUT = 4        # action_space.shape[0]
FLAT = 64 * L3     # 1600
N_HEAD = 1 + 2 * NUM_OUT          # [critic | actor | actor2] = 9
OUT_W = 128                       # lane-dense output slab width
PAD_W = OUT_W - (N_HEAD + 2 * HIDDEN)   # 55 zero lanes


# ------------------------------ fused kernel ----------------------------------
def _a3c_fused_kernel(x_ref, hx_ref, cx_ref,
                      w1_ref, b1_ref, w2_ref, b2_ref,
                      w3_ref, b3_ref, w4_ref, b4_ref,
                      wih_ref, whh_ref, bg_ref,
                      whead_ref, bhead_ref,
                      out_ref):
    f32 = jnp.float32

    def mm(a, bm):
        return jnp.dot(a, bm, preferred_element_type=f32)

    def lrelu(v):  # LeakyReLU(0.1)
        return jnp.maximum(v, 0.1 * v)

    # Shifted copies of a position-major activation (rows = l*B + b):
    # one zero-row concat per tap for the whole batch.
    def shift_prev(v):      # v[l-1], zero at l == 0
        z = jnp.zeros((B, v.shape[1]), f32)
        return jnp.concatenate([z, v[:-B, :]], axis=0)

    def shift_next(v):      # v[l+1], zero at l == last
        z = jnp.zeros((B, v.shape[1]), f32)
        return jnp.concatenate([v[B:, :], z], axis=0)

    x = x_ref[...]          # (L*B, C_IN), position-major rows, channels on lanes

    # conv1 / conv2: "same" k=3 convs as 3 accumulated matmuls each
    h1 = lrelu(mm(shift_prev(x), w1_ref[0]) + mm(x, w1_ref[1])
               + mm(shift_next(x), w1_ref[2]) + b1_ref[...])        # (L*B, 32)
    h2 = lrelu(mm(shift_prev(h1), w2_ref[0]) + mm(h1, w2_ref[1])
               + mm(shift_next(h1), w2_ref[2]) + b2_ref[...])       # (L*B, 32)

    # conv3: kernel 2, padding 1 -> output length L3 = L+1 (2 accumulated matmuls)
    z32 = jnp.zeros((B, 32), f32)
    tap_a = jnp.concatenate([z32, h2], axis=0)                      # x[t-1], (L3*B, 32)
    tap_b = jnp.concatenate([h2, z32], axis=0)                      # x[t]
    h3 = lrelu(mm(tap_a, w3_ref[0]) + mm(tap_b, w3_ref[1]) + b3_ref[...])  # (L3*B, 64)

    # conv4: 1x1 conv
    h4 = lrelu(mm(h3, w4_ref[...]) + b4_ref[...])                   # (L3*B, 64)

    # --- LSTM gates: accumulated chain of per-position matmuls ----------------
    # (replaces the flatten scatter; Wih was pre-split into (L3, 64, 4H) blocks)
    gates = mm(hx_ref[...], whh_ref[...]) + bg_ref[...]             # (B, 4H)
    for t in range(L3):
        gates = gates + mm(h4[t * B:(t + 1) * B, :], wih_ref[t])

    H = HIDDEN
    s = jax.nn.sigmoid(gates)        # full (B,128) once
    tg = jnp.tanh(gates)             # full (B,128) once
    i_g = s[:, 0:H]
    f_g = s[:, H:2 * H]
    g_g = tg[:, 2 * H:3 * H]
    o_g = s[:, 3 * H:4 * H]
    c_new = f_g * cx_ref[...] + i_g * g_g
    h_new = o_g * jnp.tanh(c_new)

    # --- fused heads [critic | actor | actor2], softsign via lane-iota mask ---
    heads = mm(h_new, whead_ref[...]) + bhead_ref[...]              # (B, 9)
    lane = jax.lax.broadcasted_iota(jnp.int32, (B, N_HEAD), 1)
    actor_lane = (lane >= 1) & (lane < 1 + NUM_OUT)
    heads = jnp.where(actor_lane, heads / (1.0 + jnp.abs(heads)), heads)

    # --- single lane-dense 128-wide store: [heads | h | c | zero-pad] ---------
    pad = jnp.zeros((B, PAD_W), f32)
    out_ref[...] = jnp.concatenate([heads, h_new, c_new, pad], axis=1)


def _full_spec(a):
    nd = a.ndim
    return pl.BlockSpec(a.shape, lambda i, nd=nd: (0,) * nd)


# ------------------------------ params & packing ------------------------------
def init_params(key):
    ks = jax.random.split(key, 16)

    def n(k, shape, scale):
        return (scale * jax.random.normal(k, shape)).astype(jnp.float32)

    params = dict(
        w1=n(ks[0], (32, C_IN, 3), 0.3), b1=n(ks[1], (32,), 0.1),
        w2=n(ks[2], (32, 32, 3), 0.15),  b2=n(ks[3], (32,), 0.1),
        w3=n(ks[4], (64, 32, 2), 0.15),  b3=n(ks[5], (64,), 0.1),
        w4=n(ks[6], (64, 64, 1), 0.15),  b4=n(ks[7], (64,), 0.1),
        # LSTMCell(1600, HIDDEN): gate order (i, f, g, o)
        wih=n(ks[8], (4 * HIDDEN, FLAT), 0.02),
        whh=n(ks[9], (4 * HIDDEN, HIDDEN), 0.1),
        bih=jnp.zeros((4 * HIDDEN,), jnp.float32).at[HIDDEN:2 * HIDDEN].set(1.0),
        bhh=jnp.zeros((4 * HIDDEN,), jnp.float32),
        wc=n(ks[10], (1, HIDDEN), 0.3),         bc=jnp.zeros((1,), jnp.float32),
        wa=n(ks[11], (NUM_OUT, HIDDEN), 0.01),  ba=jnp.zeros((NUM_OUT,), jnp.float32),
        wa2=n(ks[12], (NUM_OUT, HIDDEN), 0.01), ba2=jnp.zeros((NUM_OUT,), jnp.float32),
    )
    return params


def pack_params(p):
    """One-time weight repacking (hoisted out of the per-call forward)."""
    H = HIDDEN
    return dict(
        # per-tap conv matrices, stacked on a leading tap axis: [k, in, out]
        w1=jnp.transpose(p["w1"], (2, 1, 0)),     # (3, C_IN, 32)
        b1=p["b1"][None, :],
        w2=jnp.transpose(p["w2"], (2, 1, 0)),     # (3, 32, 32)
        b2=p["b2"][None, :],
        w3=jnp.transpose(p["w3"], (2, 1, 0)),     # (2, 32, 64)
        b3=p["b3"][None, :],
        w4=p["w4"][:, :, 0].T,                    # (64, 64)
        b4=p["b4"][None, :],
        # Wih split per position t: wih[t, c, g] = Wih[g, c*L3 + t]
        # (matches the PyTorch x.view(B,-1) flatten order c*L3 + t)
        wih=jnp.transpose(p["wih"].reshape(4 * H, 64, L3), (2, 1, 0)),   # (L3, 64, 4H)
        whh=p["whh"].T,                           # (H, 4H)
        bg=(p["bih"] + p["bhh"])[None, :],        # (1, 4H)
        # heads: [critic | actor | actor2]
        whead=jnp.concatenate([p["wc"].T, p["wa"].T, p["wa2"].T], axis=1),   # (H, 9)
        bhead=jnp.concatenate([p["bc"], p["ba"], p["ba2"]])[None, :],        # (1, 9)
    )


# ------------------------------ wrapper ---------------------------------------
def a3c_conv_forward(packed, x, hx, cx):
    H = HIDDEN
    f32 = jnp.float32
    pp = packed

    # input as (L*B, C_IN): position-major rows, channels on lanes
    x_rows = jnp.transpose(x, (2, 0, 1)).reshape(L * B, C_IN)

    args = (x_rows, hx, cx,
            pp["w1"], pp["b1"], pp["w2"], pp["b2"],
            pp["w3"], pp["b3"], pp["w4"], pp["b4"],
            pp["wih"], pp["whh"], pp["bg"],
            pp["whead"], pp["bhead"])

    out = pl.pallas_call(
        _a3c_fused_kernel,
        out_shape=jax.ShapeDtypeStruct((B, OUT_W), f32),
        grid=(1,),
        in_specs=[_full_spec(a) for a in args],
        out_specs=pl.BlockSpec((B, OUT_W), lambda i: (0, 0)),
        compiler_params=pltpu.CompilerParams(dimension_semantics=("arbitrary",)),
    )(*args)

    critic = out[:, 0:1]
    actor = out[:, 1:1 + NUM_OUT]
    actor2 = out[:, 1 + NUM_OUT:N_HEAD]
    hx_new = out[:, N_HEAD:N_HEAD + H]
    cx_new = out[:, N_HEAD + H:N_HEAD + 2 * H]
    return critic, actor, actor2, hx_new, cx_new


# ------------------------------ pure-JAX reference ----------------------------
def reference_forward(params, x, hx, cx):
    p = params
    H = HIDDEN

    def conv1d(v, w, b, pad):
        y = jax.lax.conv_general_dilated(
            v, w, window_strides=(1,), padding=[(pad, pad)],
            dimension_numbers=("NCH", "OIH", "NCH"))
        return y + b[None, :, None]

    def lrelu(v):
        return jnp.maximum(v, 0.1 * v)

    h = lrelu(conv1d(x, p["w1"], p["b1"], 1))
    h = lrelu(conv1d(h, p["w2"], p["b2"], 1))
    h = lrelu(conv1d(h, p["w3"], p["b3"], 1))
    h = lrelu(conv1d(h, p["w4"], p["b4"], 0))
    xf = h.reshape(h.shape[0], -1)

    gates = xf @ p["wih"].T + p["bih"] + hx @ p["whh"].T + p["bhh"]
    i = jax.nn.sigmoid(gates[:, 0:H])
    f = jax.nn.sigmoid(gates[:, H:2 * H])
    g = jnp.tanh(gates[:, 2 * H:3 * H])
    o = jax.nn.sigmoid(gates[:, 3 * H:4 * H])
    c_new = f * cx + i * g
    h_new = o * jnp.tanh(c_new)

    critic = h_new @ p["wc"].T + p["bc"]
    a1 = h_new @ p["wa"].T + p["ba"]
    actor = a1 / (1.0 + jnp.abs(a1))
    actor2 = h_new @ p["wa2"].T + p["ba2"]
    return critic, actor, actor2, h_new, c_new


if __name__ == "__main__":
    key = jax.random.PRNGKey(0)
    kp, kx, kh, kc = jax.random.split(key, 4)
    params = init_params(kp)
    packed = pack_params(params)          # one-time repack, outside the step loop
    x = jax.random.normal(kx, (B, C_IN, L), jnp.float32)
    hx = 0.1 * jax.random.normal(kh, (B, HIDDEN), jnp.float32)
    cx = 0.1 * jax.random.normal(kc, (B, HIDDEN), jnp.float32)

    fwd = jax.jit(a3c_conv_forward)
    outs = jax.block_until_ready(fwd(packed, x, hx, cx))

    refs = reference_forward(params, x, hx, cx)
    for o, r in zip(outs, refs):
        if not jnp.allclose(o, r, atol=1e-4, rtol=1e-4):
            raise AssertionError("Pallas output does not match reference")

    print("KERNEL_OK")
</pallas_src>

<mosaic_0001>
module attributes {stable_mosaic.version = 11 : i64} {
  func.func @_a3c_fused_kernel(%arg0: i32, %arg1: memref<48x4xf32, #tpu.memory_space<vmem>>, %arg2: memref<2x32xf32, #tpu.memory_space<vmem>>, %arg3: memref<2x32xf32, #tpu.memory_space<vmem>>, %arg4: memref<3x4x32xf32, #tpu.memory_space<vmem>>, %arg5: memref<1x32xf32, #tpu.memory_space<vmem>>, %arg6: memref<3x32x32xf32, #tpu.memory_space<vmem>>, %arg7: memref<1x32xf32, #tpu.memory_space<vmem>>, %arg8: memref<2x32x64xf32, #tpu.memory_space<vmem>>, %arg9: memref<1x64xf32, #tpu.memory_space<vmem>>, %arg10: memref<64x64xf32, #tpu.memory_space<vmem>>, %arg11: memref<1x64xf32, #tpu.memory_space<vmem>>, %arg12: memref<25x64x128xf32, #tpu.memory_space<vmem>>, %arg13: memref<32x128xf32, #tpu.memory_space<vmem>>, %arg14: memref<1x128xf32, #tpu.memory_space<vmem>>, %arg15: memref<32x9xf32, #tpu.memory_space<vmem>>, %arg16: memref<1x9xf32, #tpu.memory_space<vmem>>, %arg17: memref<2x128xf32, #tpu.memory_space<vmem>>) attributes {dimension_semantics = [#tpu.dimension_semantics<arbitrary>], iteration_bounds = array<i64: 1>, scalar_prefetch = 0 : i64, scratch_operands = 0 : i64, tpu.core_type = #tpu.core_type<tc>, window_params = [{pipeline_mode = #tpu.pipeline_mode<synchronous>, transform_indices = @transform_0, window_bounds = array<i64: 48, 4>}, {pipeline_mode = #tpu.pipeline_mode<synchronous>, transform_indices = @transform_1, window_bounds = array<i64: 2, 32>}, {pipeline_mode = #tpu.pipeline_mode<synchronous>, transform_indices = @transform_2, window_bounds = array<i64: 2, 32>}, {pipeline_mode = #tpu.pipeline_mode<synchronous>, transform_indices = @transform_3, window_bounds = array<i64: 3, 4, 32>}, {pipeline_mode = #tpu.pipeline_mode<synchronous>, transform_indices = @transform_4, window_bounds = array<i64: 1, 32>}, {pipeline_mode = #tpu.pipeline_mode<synchronous>, transform_indices = @transform_5, window_bounds = array<i64: 3, 32, 32>}, {pipeline_mode = #tpu.pipeline_mode<synchronous>, transform_indices = @transform_6, window_bounds = array<i64: 1, 32>}, {pipeline_mode = #tpu.pipeline_mode<synchronous>, transform_indices = @transform_7, window_bounds = array<i64: 2, 32, 64>}, {pipeline_mode = #tpu.pipeline_mode<synchronous>, transform_indices = @transform_8, window_bounds = array<i64: 1, 64>}, {pipeline_mode = #tpu.pipeline_mode<synchronous>, transform_indices = @transform_9, window_bounds = array<i64: 64, 64>}, {pipeline_mode = #tpu.pipeline_mode<synchronous>, transform_indices = @transform_10, window_bounds = array<i64: 1, 64>}, {pipeline_mode = #tpu.pipeline_mode<synchronous>, transform_indices = @transform_11, window_bounds = array<i64: 25, 64, 128>}, {pipeline_mode = #tpu.pipeline_mode<synchronous>, transform_indices = @transform_12, window_bounds = array<i64: 32, 128>}, {pipeline_mode = #tpu.pipeline_mode<synchronous>, transform_indices = @transform_13, window_bounds = array<i64: 1, 128>}, {pipeline_mode = #tpu.pipeline_mode<synchronous>, transform_indices = @transform_14, window_bounds = array<i64: 32, 9>}, {pipeline_mode = #tpu.pipeline_mode<synchronous>, transform_indices = @transform_15, window_bounds = array<i64: 1, 9>}, {pipeline_mode = #tpu.pipeline_mode<synchronous>, transform_indices = @transform_16, window_bounds = array<i64: 2, 128>}]} {
    %c0 = arith.constant 0 : index
    %c0_0 = arith.constant 0 : index
    %0 = vector.load %arg1[%c0, %c0_0] : memref<48x4xf32, #tpu.memory_space<vmem>>, vector<48x4xf32>
    %cst = arith.constant 0.000000e+00 : f32
    %1 = vector.broadcast %cst : f32 to vector<2x4xf32>
    %2 = vector.extract_strided_slice %0 {offsets = [0, 0], sizes = [46, 4], strides = [1, 1]} : vector<48x4xf32> to vector<46x4xf32>
    %3 = tpu.concatenate %1, %2 in 0 : vector<2x4xf32>, vector<46x4xf32> -> vector<48x4xf32>
    %c0_1 = arith.constant 0 : index
    %c0_2 = arith.constant 0 : index
    %c0_3 = arith.constant 0 : index
    %4 = vector.load %arg4[%c0_1, %c0_2, %c0_3] : memref<3x4x32xf32, #tpu.memory_space<vmem>>, vector<1x4x32xf32>
    %5 = vector.shape_cast %4 : vector<1x4x32xf32> to vector<4x32xf32>
    %cst_4 = arith.constant dense<0.000000e+00> : vector<48x32xf32>
    %6 = tpu.matmul %3, %5, %cst_4 {dimension_numbers = #tpu.dot_dimension_numbers<[1], [0], [0], [1], [0, 0, 1, 1], [], []>} : vector<48x4xf32>, vector<4x32xf32>, vector<48x32xf32> -> vector<48x32xf32>
    %c1 = arith.constant 1 : index
    %c0_5 = arith.constant 0 : index
    %c0_6 = arith.constant 0 : index
    %7 = vector.load %arg4[%c1, %c0_5, %c0_6] : memref<3x4x32xf32, #tpu.memory_space<vmem>>, vector<1x4x32xf32>
    %8 = vector.shape_cast %7 : vector<1x4x32xf32> to vector<4x32xf32>
    %cst_7 = arith.constant dense<0.000000e+00> : vector<48x32xf32>
    %9 = tpu.matmul %0, %8, %cst_7 {dimension_numbers = #tpu.dot_dimension_numbers<[1], [0], [0], [1], [0, 0, 1, 1], [], []>} : vector<48x4xf32>, vector<4x32xf32>, vector<48x32xf32> -> vector<48x32xf32>
    %10 = arith.addf %6, %9 : vector<48x32xf32>
    %cst_8 = arith.constant 0.000000e+00 : f32
    %11 = vector.broadcast %cst_8 : f32 to vector<2x4xf32>
    %12 = vector.extract_strided_slice %0 {offsets = [2, 0], sizes = [46, 4], strides = [1, 1]} : vector<48x4xf32> to vector<46x4xf32>
    %13 = tpu.concatenate %12, %11 in 0 : vector<46x4xf32>, vector<2x4xf32> -> vector<48x4xf32>
    %c2 = arith.constant 2 : index
    %c0_9 = arith.constant 0 : index
    %c0_10 = arith.constant 0 : index
    %14 = vector.load %arg4[%c2, %c0_9, %c0_10] : memref<3x4x32xf32, #tpu.memory_space<vmem>>, vector<1x4x32xf32>
    %15 = vector.shape_cast %14 : vector<1x4x32xf32> to vector<4x32xf32>
    %cst_11 = arith.constant dense<0.000000e+00> : vector<48x32xf32>
    %16 = tpu.matmul %13, %15, %cst_11 {dimension_numbers = #tpu.dot_dimension_numbers<[1], [0], [0], [1], [0, 0, 1, 1], [], []>} : vector<48x4xf32>, vector<4x32xf32>, vector<48x32xf32> -> vector<48x32xf32>
    %17 = arith.addf %10, %16 : vector<48x32xf32>
    %c0_12 = arith.constant 0 : index
    %c0_13 = arith.constant 0 : index
    %18 = vector.load %arg5[%c0_12, %c0_13] : memref<1x32xf32, #tpu.memory_space<vmem>>, vector<1x32xf32>
    %19 = vector.broadcast %18 : vector<1x32xf32> to vector<48x32xf32>
    %20 = arith.addf %17, %19 : vector<48x32xf32>
    %cst_14 = arith.constant 1.000000e-01 : f32
    %21 = vector.broadcast %cst_14 : f32 to vector<48x32xf32>
    %22 = arith.mulf %21, %20 : vector<48x32xf32>
    %23 = arith.maximumf %20, %22 : vector<48x32xf32>
    %cst_15 = arith.constant 0.000000e+00 : f32
    %24 = vector.broadcast %cst_15 : f32 to vector<2x32xf32>
    %25 = vector.extract_strided_slice %23 {offsets = [0, 0], sizes = [46, 32], strides = [1, 1]} : vector<48x32xf32> to vector<46x32xf32>
    %26 = tpu.concatenate %24, %25 in 0 : vector<2x32xf32>, vector<46x32xf32> -> vector<48x32xf32>
    %c0_16 = arith.constant 0 : index
    %c0_17 = arith.constant 0 : index
    %c0_18 = arith.constant 0 : index
    %27 = vector.load %arg6[%c0_16, %c0_17, %c0_18] : memref<3x32x32xf32, #tpu.memory_space<vmem>>, vector<1x32x32xf32>
    %28 = vector.shape_cast %27 : vector<1x32x32xf32> to vector<32x32xf32>
    %cst_19 = arith.constant dense<0.000000e+00> : vector<48x32xf32>
    %29 = tpu.matmul %26, %28, %cst_19 {dimension_numbers = #tpu.dot_dimension_numbers<[1], [0], [0], [1], [0, 0, 1, 1], [], []>} : vector<48x32xf32>, vector<32x32xf32>, vector<48x32xf32> -> vector<48x32xf32>
    %c1_20 = arith.constant 1 : index
    %c0_21 = arith.constant 0 : index
    %c0_22 = arith.constant 0 : index
    %30 = vector.load %arg6[%c1_20, %c0_21, %c0_22] : memref<3x32x32xf32, #tpu.memory_space<vmem>>, vector<1x32x32xf32>
    %31 = vector.shape_cast %30 : vector<1x32x32xf32> to vector<32x32xf32>
    %cst_23 = arith.constant dense<0.000000e+00> : vector<48x32xf32>
    %32 = tpu.matmul %23, %31, %cst_23 {dimension_numbers = #tpu.dot_dimension_numbers<[1], [0], [0], [1], [0, 0, 1, 1], [], []>} : vector<48x32xf32>, vector<32x32xf32>, vector<48x32xf32> -> vector<48x32xf32>
    %33 = arith.addf %29, %32 : vector<48x32xf32>
    %cst_24 = arith.constant 0.000000e+00 : f32
    %34 = vector.broadcast %cst_24 : f32 to vector<2x32xf32>
    %35 = vector.extract_strided_slice %23 {offsets = [2, 0], sizes = [46, 32], strides = [1, 1]} : vector<48x32xf32> to vector<46x32xf32>
    %36 = tpu.concatenate %35, %34 in 0 : vector<46x32xf32>, vector<2x32xf32> -> vector<48x32xf32>
    %c2_25 = arith.constant 2 : index
    %c0_26 = arith.constant 0 : index
    %c0_27 = arith.constant 0 : index
    %37 = vector.load %arg6[%c2_25, %c0_26, %c0_27] : memref<3x32x32xf32, #tpu.memory_space<vmem>>, vector<1x32x32xf32>
    %38 = vector.shape_cast %37 : vector<1x32x32xf32> to vector<32x32xf32>
    %cst_28 = arith.constant dense<0.000000e+00> : vector<48x32xf32>
    %39 = tpu.matmul %36, %38, %cst_28 {dimension_numbers = #tpu.dot_dimension_numbers<[1], [0], [0], [1], [0, 0, 1, 1], [], []>} : vector<48x32xf32>, vector<32x32xf32>, vector<48x32xf32> -> vector<48x32xf32>
    %40 = arith.addf %33, %39 : vector<48x32xf32>
    %c0_29 = arith.constant 0 : index
    %c0_30 = arith.constant 0 : index
    %41 = vector.load %arg7[%c0_29, %c0_30] : memref<1x32xf32, #tpu.memory_space<vmem>>, vector<1x32xf32>
    %42 = vector.broadcast %41 : vector<1x32xf32> to vector<48x32xf32>
    %43 = arith.addf %40, %42 : vector<48x32xf32>
    %cst_31 = arith.constant 1.000000e-01 : f32
    %44 = vector.broadcast %cst_31 : f32 to vector<48x32xf32>
    %45 = arith.mulf %44, %43 : vector<48x32xf32>
    %46 = arith.maximumf %43, %45 : vector<48x32xf32>
    %cst_32 = arith.constant 0.000000e+00 : f32
    %47 = vector.broadcast %cst_32 : f32 to vector<2x32xf32>
    %48 = tpu.concatenate %47, %46 in 0 : vector<2x32xf32>, vector<48x32xf32> -> vector<50x32xf32>
    %49 = tpu.concatenate %46, %47 in 0 : vector<48x32xf32>, vector<2x32xf32> -> vector<50x32xf32>
    %c0_33 = arith.constant 0 : index
    %c0_34 = arith.constant 0 : index
    %c0_35 = arith.constant 0 : index
    %50 = vector.load %arg8[%c0_33, %c0_34, %c0_35] : memref<2x32x64xf32, #tpu.memory_space<vmem>>, vector<1x32x64xf32>
    %51 = vector.shape_cast %50 : vector<1x32x64xf32> to vector<32x64xf32>
    %cst_36 = arith.constant dense<0.000000e+00> : vector<50x64xf32>
    %52 = tpu.matmul %48, %51, %cst_36 {dimension_numbers = #tpu.dot_dimension_numbers<[1], [0], [0], [1], [0, 0, 1, 1], [], []>} : vector<50x32xf32>, vector<32x64xf32>, vector<50x64xf32> -> vector<50x64xf32>
    %c1_37 = arith.constant 1 : index
    %c0_38 = arith.constant 0 : index
    %c0_39 = arith.constant 0 : index
    %53 = vector.load %arg8[%c1_37, %c0_38, %c0_39] : memref<2x32x64xf32, #tpu.memory_space<vmem>>, vector<1x32x64xf32>
    %54 = vector.shape_cast %53 : vector<1x32x64xf32> to vector<32x64xf32>
    %cst_40 = arith.constant dense<0.000000e+00> : vector<50x64xf32>
    %55 = tpu.matmul %49, %54, %cst_40 {dimension_numbers = #tpu.dot_dimension_numbers<[1], [0], [0], [1], [0, 0, 1, 1], [], []>} : vector<50x32xf32>, vector<32x64xf32>, vector<50x64xf32> -> vector<50x64xf32>
    %56 = arith.addf %52, %55 : vector<50x64xf32>
    %c0_41 = arith.constant 0 : index
    %c0_42 = arith.constant 0 : index
    %57 = vector.load %arg9[%c0_41, %c0_42] : memref<1x64xf32, #tpu.memory_space<vmem>>, vector<1x64xf32>
    %58 = vector.broadcast %57 : vector<1x64xf32> to vector<50x64xf32>
    %59 = arith.addf %56, %58 : vector<50x64xf32>
    %cst_43 = arith.constant 1.000000e-01 : f32
    %60 = vector.broadcast %cst_43 : f32 to vector<50x64xf32>
    %61 = arith.mulf %60, %59 : vector<50x64xf32>
    %62 = arith.maximumf %59, %61 : vector<50x64xf32>
    %c0_44 = arith.constant 0 : index
    %c0_45 = arith.constant 0 : index
    %63 = vector.load %arg10[%c0_44, %c0_45] : memref<64x64xf32, #tpu.memory_space<vmem>>, vector<64x64xf32>
    %cst_46 = arith.constant dense<0.000000e+00> : vector<50x64xf32>
    %64 = tpu.matmul %62, %63, %cst_46 {dimension_numbers = #tpu.dot_dimension_numbers<[1], [0], [0], [1], [0, 0, 1, 1], [], []>} : vector<50x64xf32>, vector<64x64xf32>, vector<50x64xf32> -> vector<50x64xf32>
    %c0_47 = arith.constant 0 : index
    %c0_48 = arith.constant 0 : index
    %65 = vector.load %arg11[%c0_47, %c0_48] : memref<1x64xf32, #tpu.memory_space<vmem>>, vector<1x64xf32>
    %66 = vector.broadcast %65 : vector<1x64xf32> to vector<50x64xf32>
    %67 = arith.addf %64, %66 : vector<50x64xf32>
    %cst_49 = arith.constant 1.000000e-01 : f32
    %68 = vector.broadcast %cst_49 : f32 to vector<50x64xf32>
    %69 = arith.mulf %68, %67 : vector<50x64xf32>
    %70 = arith.maximumf %67, %69 : vector<50x64xf32>
    %c0_50 = arith.constant 0 : index
    %c0_51 = arith.constant 0 : index
    %71 = vector.load %arg2[%c0_50, %c0_51] : memref<2x32xf32, #tpu.memory_space<vmem>>, vector<2x32xf32>
    %c0_52 = arith.constant 0 : index
    %c0_53 = arith.constant 0 : index
    %72 = vector.load %arg13[%c0_52, %c0_53] : memref<32x128xf32, #tpu.memory_space<vmem>>, vector<32x128xf32>
    %cst_54 = arith.constant dense<0.000000e+00> : vector<2x128xf32>
    %73 = tpu.matmul %71, %72, %cst_54 {dimension_numbers = #tpu.dot_dimension_numbers<[1], [0], [0], [1], [0, 0, 1, 1], [], []>} : vector<2x32xf32>, vector<32x128xf32>, vector<2x128xf32> -> vector<2x128xf32>
    %c0_55 = arith.constant 0 : index
    %c0_56 = arith.constant 0 : index
    %74 = vector.load %arg14[%c0_55, %c0_56] : memref<1x128xf32, #tpu.memory_space<vmem>>, vector<1x128xf32>
    %75 = vector.broadcast %74 : vector<1x128xf32> to vector<2x128xf32>
    %76 = arith.addf %73, %75 : vector<2x128xf32>
    %77 = vector.extract_strided_slice %70 {offsets = [0, 0], sizes = [2, 64], strides = [1, 1]} : vector<50x64xf32> to vector<2x64xf32>
    %c0_57 = arith.constant 0 : index
    %c0_58 = arith.constant 0 : index
    %c0_59 = arith.constant 0 : index
    %78 = vector.load %arg12[%c0_57, %c0_58, %c0_59] : memref<25x64x128xf32, #tpu.memory_space<vmem>>, vector<1x64x128xf32>
    %79 = vector.shape_cast %78 : vector<1x64x128xf32> to vector<64x128xf32>
    %cst_60 = arith.constant dense<0.000000e+00> : vector<2x128xf32>
    %80 = tpu.matmul %77, %79, %cst_60 {dimension_numbers = #tpu.dot_dimension_numbers<[1], [0], [0], [1], [0, 0, 1, 1], [], []>} : vector<2x64xf32>, vector<64x128xf32>, vector<2x128xf32> -> vector<2x128xf32>
    %81 = arith.addf %76, %80 : vector<2x128xf32>
    %82 = vector.extract_strided_slice %70 {offsets = [2, 0], sizes = [2, 64], strides = [1, 1]} : vector<50x64xf32> to vector<2x64xf32>
    %c1_61 = arith.constant 1 : index
    %c0_62 = arith.constant 0 : index
    %c0_63 = arith.constant 0 : index
    %83 = vector.load %arg12[%c1_61, %c0_62, %c0_63] : memref<25x64x128xf32, #tpu.memory_space<vmem>>, vector<1x64x128xf32>
    %84 = vector.shape_cast %83 : vector<1x64x128xf32> to vector<64x128xf32>
    %cst_64 = arith.constant dense<0.000000e+00> : vector<2x128xf32>
    %85 = tpu.matmul %82, %84, %cst_64 {dimension_numbers = #tpu.dot_dimension_numbers<[1], [0], [0], [1], [0, 0, 1, 1], [], []>} : vector<2x64xf32>, vector<64x128xf32>, vector<2x128xf32> -> vector<2x128xf32>
    %86 = arith.addf %81, %85 : vector<2x128xf32>
    %87 = vector.extract_strided_slice %70 {offsets = [4, 0], sizes = [2, 64], strides = [1, 1]} : vector<50x64xf32> to vector<2x64xf32>
    %c2_65 = arith.constant 2 : index
    %c0_66 = arith.constant 0 : index
    %c0_67 = arith.constant 0 : index
    %88 = vector.load %arg12[%c2_65, %c0_66, %c0_67] : memref<25x64x128xf32, #tpu.memory_space<vmem>>, vector<1x64x128xf32>
    %89 = vector.shape_cast %88 : vector<1x64x128xf32> to vector<64x128xf32>
    %cst_68 = arith.constant dense<0.000000e+00> : vector<2x128xf32>
    %90 = tpu.matmul %87, %89, %cst_68 {dimension_numbers = #tpu.dot_dimension_numbers<[1], [0], [0], [1], [0, 0, 1, 1], [], []>} : vector<2x64xf32>, vector<64x128xf32>, vector<2x128xf32> -> vector<2x128xf32>
    %91 = arith.addf %86, %90 : vector<2x128xf32>
    %92 = vector.extract_strided_slice %70 {offsets = [6, 0], sizes = [2, 64], strides = [1, 1]} : vector<50x64xf32> to vector<2x64xf32>
    %c3 = arith.constant 3 : index
    %c0_69 = arith.constant 0 : index
    %c0_70 = arith.constant 0 : index
    %93 = vector.load %arg12[%c3, %c0_69, %c0_70] : memref<25x64x128xf32, #tpu.memory_space<vmem>>, vector<1x64x128xf32>
    %94 = vector.shape_cast %93 : vector<1x64x128xf32> to vector<64x128xf32>
    %cst_71 = arith.constant dense<0.000000e+00> : vector<2x128xf32>
    %95 = tpu.matmul %92, %94, %cst_71 {dimension_numbers = #tpu.dot_dimension_numbers<[1], [0], [0], [1], [0, 0, 1, 1], [], []>} : vector<2x64xf32>, vector<64x128xf32>, vector<2x128xf32> -> vector<2x128xf32>
    %96 = arith.addf %91, %95 : vector<2x128xf32>
    %97 = vector.extract_strided_slice %70 {offsets = [8, 0], sizes = [2, 64], strides = [1, 1]} : vector<50x64xf32> to vector<2x64xf32>
    %c4 = arith.constant 4 : index
    %c0_72 = arith.constant 0 : index
    %c0_73 = arith.constant 0 : index
    %98 = vector.load %arg12[%c4, %c0_72, %c0_73] : memref<25x64x128xf32, #tpu.memory_space<vmem>>, vector<1x64x128xf32>
    %99 = vector.shape_cast %98 : vector<1x64x128xf32> to vector<64x128xf32>
    %cst_74 = arith.constant dense<0.000000e+00> : vector<2x128xf32>
    %100 = tpu.matmul %97, %99, %cst_74 {dimension_numbers = #tpu.dot_dimension_numbers<[1], [0], [0], [1], [0, 0, 1, 1], [], []>} : vector<2x64xf32>, vector<64x128xf32>, vector<2x128xf32> -> vector<2x128xf32>
    %101 = arith.addf %96, %100 : vector<2x128xf32>
    %102 = vector.extract_strided_slice %70 {offsets = [10, 0], sizes = [2, 64], strides = [1, 1]} : vector<50x64xf32> to vector<2x64xf32>
    %c5 = arith.constant 5 : index
    %c0_75 = arith.constant 0 : index
    %c0_76 = arith.constant 0 : index
    %103 = vector.load %arg12[%c5, %c0_75, %c0_76] : memref<25x64x128xf32, #tpu.memory_space<vmem>>, vector<1x64x128xf32>
    %104 = vector.shape_cast %103 : vector<1x64x128xf32> to vector<64x128xf32>
    %cst_77 = arith.constant dense<0.000000e+00> : vector<2x128xf32>
    %105 = tpu.matmul %102, %104, %cst_77 {dimension_numbers = #tpu.dot_dimension_numbers<[1], [0], [0], [1], [0, 0, 1, 1], [], []>} : vector<2x64xf32>, vector<64x128xf32>, vector<2x128xf32> -> vector<2x128xf32>
    %106 = arith.addf %101, %105 : vector<2x128xf32>
    %107 = vector.extract_strided_slice %70 {offsets = [12, 0], sizes = [2, 64], strides = [1, 1]} : vector<50x64xf32> to vector<2x64xf32>
    %c6 = arith.constant 6 : index
    %c0_78 = arith.constant 0 : index
    %c0_79 = arith.constant 0 : index
    %108 = vector.load %arg12[%c6, %c0_78, %c0_79] : memref<25x64x128xf32, #tpu.memory_space<vmem>>, vector<1x64x128xf32>
    %109 = vector.shape_cast %108 : vector<1x64x128xf32> to vector<64x128xf32>
    %cst_80 = arith.constant dense<0.000000e+00> : vector<2x128xf32>
    %110 = tpu.matmul %107, %109, %cst_80 {dimension_numbers = #tpu.dot_dimension_numbers<[1], [0], [0], [1], [0, 0, 1, 1], [], []>} : vector<2x64xf32>, vector<64x128xf32>, vector<2x128xf32> -> vector<2x128xf32>
    %111 = arith.addf %106, %110 : vector<2x128xf32>
    %112 = vector.extract_strided_slice %70 {offsets = [14, 0], sizes = [2, 64], strides = [1, 1]} : vector<50x64xf32> to vector<2x64xf32>
    %c7 = arith.constant 7 : index
    %c0_81 = arith.constant 0 : index
    %c0_82 = arith.constant 0 : index
    %113 = vector.load %arg12[%c7, %c0_81, %c0_82] : memref<25x64x128xf32, #tpu.memory_space<vmem>>, vector<1x64x128xf32>
    %114 = vector.shape_cast %113 : vector<1x64x128xf32> to vector<64x128xf32>
    %cst_83 = arith.constant dense<0.000000e+00> : vector<2x128xf32>
    %115 = tpu.matmul %112, %114, %cst_83 {dimension_numbers = #tpu.dot_dimension_numbers<[1], [0], [0], [1], [0, 0, 1, 1], [], []>} : vector<2x64xf32>, vector<64x128xf32>, vector<2x128xf32> -> vector<2x128xf32>
    %116 = arith.addf %111, %115 : vector<2x128xf32>
    %117 = vector.extract_strided_slice %70 {offsets = [16, 0], sizes = [2, 64], strides = [1, 1]} : vector<50x64xf32> to vector<2x64xf32>
    %c8 = arith.constant 8 : index
    %c0_84 = arith.constant 0 : index
    %c0_85 = arith.constant 0 : index
    %118 = vector.load %arg12[%c8, %c0_84, %c0_85] : memref<25x64x128xf32, #tpu.memory_space<vmem>>, vector<1x64x128xf32>
    %119 = vector.shape_cast %118 : vector<1x64x128xf32> to vector<64x128xf32>
    %cst_86 = arith.constant dense<0.000000e+00> : vector<2x128xf32>
    %120 = tpu.matmul %117, %119, %cst_86 {dimension_numbers = #tpu.dot_dimension_numbers<[1], [0], [0], [1], [0, 0, 1, 1], [], []>} : vector<2x64xf32>, vector<64x128xf32>, vector<2x128xf32> -> vector<2x128xf32>
    %121 = arith.addf %116, %120 : vector<2x128xf32>
    %122 = vector.extract_strided_slice %70 {offsets = [18, 0], sizes = [2, 64], strides = [1, 1]} : vector<50x64xf32> to vector<2x64xf32>
    %c9 = arith.constant 9 : index
    %c0_87 = arith.constant 0 : index
    %c0_88 = arith.constant 0 : index
    %123 = vector.load %arg12[%c9, %c0_87, %c0_88] : memref<25x64x128xf32, #tpu.memory_space<vmem>>, vector<1x64x128xf32>
    %124 = vector.shape_cast %123 : vector<1x64x128xf32> to vector<64x128xf32>
    %cst_89 = arith.constant dense<0.000000e+00> : vector<2x128xf32>
    %125 = tpu.matmul %122, %124, %cst_89 {dimension_numbers = #tpu.dot_dimension_numbers<[1], [0], [0], [1], [0, 0, 1, 1], [], []>} : vector<2x64xf32>, vector<64x128xf32>, vector<2x128xf32> -> vector<2x128xf32>
    %126 = arith.addf %121, %125 : vector<2x128xf32>
    %127 = vector.extract_strided_slice %70 {offsets = [20, 0], sizes = [2, 64], strides = [1, 1]} : vector<50x64xf32> to vector<2x64xf32>
    %c10 = arith.constant 10 : index
    %c0_90 = arith.constant 0 : index
    %c0_91 = arith.constant 0 : index
    %128 = vector.load %arg12[%c10, %c0_90, %c0_91] : memref<25x64x128xf32, #tpu.memory_space<vmem>>, vector<1x64x128xf32>
    %129 = vector.shape_cast %128 : vector<1x64x128xf32> to vector<64x128xf32>
    %cst_92 = arith.constant dense<0.000000e+00> : vector<2x128xf32>
    %130 = tpu.matmul %127, %129, %cst_92 {dimension_numbers = #tpu.dot_dimension_numbers<[1], [0], [0], [1], [0, 0, 1, 1], [], []>} : vector<2x64xf32>, vector<64x128xf32>, vector<2x128xf32> -> vector<2x128xf32>
    %131 = arith.addf %126, %130 : vector<2x128xf32>
    %132 = vector.extract_strided_slice %70 {offsets = [22, 0], sizes = [2, 64], strides = [1, 1]} : vector<50x64xf32> to vector<2x64xf32>
    %c11 = arith.constant 11 : index
    %c0_93 = arith.constant 0 : index
    %c0_94 = arith.constant 0 : index
    %133 = vector.load %arg12[%c11, %c0_93, %c0_94] : memref<25x64x128xf32, #tpu.memory_space<vmem>>, vector<1x64x128xf32>
    %134 = vector.shape_cast %133 : vector<1x64x128xf32> to vector<64x128xf32>
    %cst_95 = arith.constant dense<0.000000e+00> : vector<2x128xf32>
    %135 = tpu.matmul %132, %134, %cst_95 {dimension_numbers = #tpu.dot_dimension_numbers<[1], [0], [0], [1], [0, 0, 1, 1], [], []>} : vector<2x64xf32>, vector<64x128xf32>, vector<2x128xf32> -> vector<2x128xf32>
    %136 = arith.addf %131, %135 : vector<2x128xf32>
    %137 = vector.extract_strided_slice %70 {offsets = [24, 0], sizes = [2, 64], strides = [1, 1]} : vector<50x64xf32> to vector<2x64xf32>
    %c12 = arith.constant 12 : index
    %c0_96 = arith.constant 0 : index
    %c0_97 = arith.constant 0 : index
    %138 = vector.load %arg12[%c12, %c0_96, %c0_97] : memref<25x64x128xf32, #tpu.memory_space<vmem>>, vector<1x64x128xf32>
    %139 = vector.shape_cast %138 : vector<1x64x128xf32> to vector<64x128xf32>
    %cst_98 = arith.constant dense<0.000000e+00> : vector<2x128xf32>
    %140 = tpu.matmul %137, %139, %cst_98 {dimension_numbers = #tpu.dot_dimension_numbers<[1], [0], [0], [1], [0, 0, 1, 1], [], []>} : vector<2x64xf32>, vector<64x128xf32>, vector<2x128xf32> -> vector<2x128xf32>
    %141 = arith.addf %136, %140 : vector<2x128xf32>
    %142 = vector.extract_strided_slice %70 {offsets = [26, 0], sizes = [2, 64], strides = [1, 1]} : vector<50x64xf32> to vector<2x64xf32>
    %c13 = arith.constant 13 : index
    %c0_99 = arith.constant 0 : index
    %c0_100 = arith.constant 0 : index
    %143 = vector.load %arg12[%c13, %c0_99, %c0_100] : memref<25x64x128xf32, #tpu.memory_space<vmem>>, vector<1x64x128xf32>
    %144 = vector.shape_cast %143 : vector<1x64x128xf32> to vector<64x128xf32>
    %cst_101 = arith.constant dense<0.000000e+00> : vector<2x128xf32>
    %145 = tpu.matmul %142, %144, %cst_101 {dimension_numbers = #tpu.dot_dimension_numbers<[1], [0], [0], [1], [0, 0, 1, 1], [], []>} : vector<2x64xf32>, vector<64x128xf32>, vector<2x128xf32> -> vector<2x128xf32>
    %146 = arith.addf %141, %145 : vector<2x128xf32>
    %147 = vector.extract_strided_slice %70 {offsets = [28, 0], sizes = [2, 64], strides = [1, 1]} : vector<50x64xf32> to vector<2x64xf32>
    %c14 = arith.constant 14 : index
    %c0_102 = arith.constant 0 : index
    %c0_103 = arith.constant 0 : index
    %148 = vector.load %arg12[%c14, %c0_102, %c0_103] : memref<25x64x128xf32, #tpu.memory_space<vmem>>, vector<1x64x128xf32>
    %149 = vector.shape_cast %148 : vector<1x64x128xf32> to vector<64x128xf32>
    %cst_104 = arith.constant dense<0.000000e+00> : vector<2x128xf32>
    %150 = tpu.matmul %147, %149, %cst_104 {dimension_numbers = #tpu.dot_dimension_numbers<[1], [0], [0], [1], [0, 0, 1, 1], [], []>} : vector<2x64xf32>, vector<64x128xf32>, vector<2x128xf32> -> vector<2x128xf32>
    %151 = arith.addf %146, %150 : vector<2x128xf32>
    %152 = vector.extract_strided_slice %70 {offsets = [30, 0], sizes = [2, 64], strides = [1, 1]} : vector<50x64xf32> to vector<2x64xf32>
    %c15 = arith.constant 15 : index
    %c0_105 = arith.constant 0 : index
    %c0_106 = arith.constant 0 : index
    %153 = vector.load %arg12[%c15, %c0_105, %c0_106] : memref<25x64x128xf32, #tpu.memory_space<vmem>>, vector<1x64x128xf32>
    %154 = vector.shape_cast %153 : vector<1x64x128xf32> to vector<64x128xf32>
    %cst_107 = arith.constant dense<0.000000e+00> : vector<2x128xf32>
    %155 = tpu.matmul %152, %154, %cst_107 {dimension_numbers = #tpu.dot_dimension_numbers<[1], [0], [0], [1], [0, 0, 1, 1], [], []>} : vector<2x64xf32>, vector<64x128xf32>, vector<2x128xf32> -> vector<2x128xf32>
    %156 = arith.addf %151, %155 : vector<2x128xf32>
    %157 = vector.extract_strided_slice %70 {offsets = [32, 0], sizes = [2, 64], strides = [1, 1]} : vector<50x64xf32> to vector<2x64xf32>
    %c16 = arith.constant 16 : index
    %c0_108 = arith.constant 0 : index
    %c0_109 = arith.constant 0 : index
    %158 = vector.load %arg12[%c16, %c0_108, %c0_109] : memref<25x64x128xf32, #tpu.memory_space<vmem>>, vector<1x64x128xf32>
    %159 = vector.shape_cast %158 : vector<1x64x128xf32> to vector<64x128xf32>
    %cst_110 = arith.constant dense<0.000000e+00> : vector<2x128xf32>
    %160 = tpu.matmul %157, %159, %cst_110 {dimension_numbers = #tpu.dot_dimension_numbers<[1], [0], [0], [1], [0, 0, 1, 1], [], []>} : vector<2x64xf32>, vector<64x128xf32>, vector<2x128xf32> -> vector<2x128xf32>
    %161 = arith.addf %156, %160 : vector<2x128xf32>
    %162 = vector.extract_strided_slice %70 {offsets = [34, 0], sizes = [2, 64], strides = [1, 1]} : vector<50x64xf32> to vector<2x64xf32>
    %c17 = arith.constant 17 : index
    %c0_111 = arith.constant 0 : index
    %c0_112 = arith.constant 0 : index
    %163 = vector.load %arg12[%c17, %c0_111, %c0_112] : memref<25x64x128xf32, #tpu.memory_space<vmem>>, vector<1x64x128xf32>
    %164 = vector.shape_cast %163 : vector<1x64x128xf32> to vector<64x128xf32>
    %cst_113 = arith.constant dense<0.000000e+00> : vector<2x128xf32>
    %165 = tpu.matmul %162, %164, %cst_113 {dimension_numbers = #tpu.dot_dimension_numbers<[1], [0], [0], [1], [0, 0, 1, 1], [], []>} : vector<2x64xf32>, vector<64x128xf32>, vector<2x128xf32> -> vector<2x128xf32>
    %166 = arith.addf %161, %165 : vector<2x128xf32>
    %167 = vector.extract_strided_slice %70 {offsets = [36, 0], sizes = [2, 64], strides = [1, 1]} : vector<50x64xf32> to vector<2x64xf32>
    %c18 = arith.constant 18 : index
    %c0_114 = arith.constant 0 : index
    %c0_115 = arith.constant 0 : index
    %168 = vector.load %arg12[%c18, %c0_114, %c0_115] : memref<25x64x128xf32, #tpu.memory_space<vmem>>, vector<1x64x128xf32>
    %169 = vector.shape_cast %168 : vector<1x64x128xf32> to vector<64x128xf32>
    %cst_116 = arith.constant dense<0.000000e+00> : vector<2x128xf32>
    %170 = tpu.matmul %167, %169, %cst_116 {dimension_numbers = #tpu.dot_dimension_numbers<[1], [0], [0], [1], [0, 0, 1, 1], [], []>} : vector<2x64xf32>, vector<64x128xf32>, vector<2x128xf32> -> vector<2x128xf32>
    %171 = arith.addf %166, %170 : vector<2x128xf32>
    %172 = vector.extract_strided_slice %70 {offsets = [38, 0], sizes = [2, 64], strides = [1, 1]} : vector<50x64xf32> to vector<2x64xf32>
    %c19 = arith.constant 19 : index
    %c0_117 = arith.constant 0 : index
    %c0_118 = arith.constant 0 : index
    %173 = vector.load %arg12[%c19, %c0_117, %c0_118] : memref<25x64x128xf32, #tpu.memory_space<vmem>>, vector<1x64x128xf32>
    %174 = vector.shape_cast %173 : vector<1x64x128xf32> to vector<64x128xf32>
    %cst_119 = arith.constant dense<0.000000e+00> : vector<2x128xf32>
    %175 = tpu.matmul %172, %174, %cst_119 {dimension_numbers = #tpu.dot_dimension_numbers<[1], [0], [0], [1], [0, 0, 1, 1], [], []>} : vector<2x64xf32>, vector<64x128xf32>, vector<2x128xf32> -> vector<2x128xf32>
    %176 = arith.addf %171, %175 : vector<2x128xf32>
    %177 = vector.extract_strided_slice %70 {offsets = [40, 0], sizes = [2, 64], strides = [1, 1]} : vector<50x64xf32> to vector<2x64xf32>
    %c20 = arith.constant 20 : index
    %c0_120 = arith.constant 0 : index
    %c0_121 = arith.constant 0 : index
    %178 = vector.load %arg12[%c20, %c0_120, %c0_121] : memref<25x64x128xf32, #tpu.memory_space<vmem>>, vector<1x64x128xf32>
    %179 = vector.shape_cast %178 : vector<1x64x128xf32> to vector<64x128xf32>
    %cst_122 = arith.constant dense<0.000000e+00> : vector<2x128xf32>
    %180 = tpu.matmul %177, %179, %cst_122 {dimension_numbers = #tpu.dot_dimension_numbers<[1], [0], [0], [1], [0, 0, 1, 1], [], []>} : vector<2x64xf32>, vector<64x128xf32>, vector<2x128xf32> -> vector<2x128xf32>
    %181 = arith.addf %176, %180 : vector<2x128xf32>
    %182 = vector.extract_strided_slice %70 {offsets = [42, 0], sizes = [2, 64], strides = [1, 1]} : vector<50x64xf32> to vector<2x64xf32>
    %c21 = arith.constant 21 : index
    %c0_123 = arith.constant 0 : index
    %c0_124 = arith.constant 0 : index
    %183 = vector.load %arg12[%c21, %c0_123, %c0_124] : memref<25x64x128xf32, #tpu.memory_space<vmem>>, vector<1x64x128xf32>
    %184 = vector.shape_cast %183 : vector<1x64x128xf32> to vector<64x128xf32>
    %cst_125 = arith.constant dense<0.000000e+00> : vector<2x128xf32>
    %185 = tpu.matmul %182, %184, %cst_125 {dimension_numbers = #tpu.dot_dimension_numbers<[1], [0], [0], [1], [0, 0, 1, 1], [], []>} : vector<2x64xf32>, vector<64x128xf32>, vector<2x128xf32> -> vector<2x128xf32>
    %186 = arith.addf %181, %185 : vector<2x128xf32>
    %187 = vector.extract_strided_slice %70 {offsets = [44, 0], sizes = [2, 64], strides = [1, 1]} : vector<50x64xf32> to vector<2x64xf32>
    %c22 = arith.constant 22 : index
    %c0_126 = arith.constant 0 : index
    %c0_127 = arith.constant 0 : index
    %188 = vector.load %arg12[%c22, %c0_126, %c0_127] : memref<25x64x128xf32, #tpu.memory_space<vmem>>, vector<1x64x128xf32>
    %189 = vector.shape_cast %188 : vector<1x64x128xf32> to vector<64x128xf32>
    %cst_128 = arith.constant dense<0.000000e+00> : vector<2x128xf32>
    %190 = tpu.matmul %187, %189, %cst_128 {dimension_numbers = #tpu.dot_dimension_numbers<[1], [0], [0], [1], [0, 0, 1, 1], [], []>} : vector<2x64xf32>, vector<64x128xf32>, vector<2x128xf32> -> vector<2x128xf32>
    %191 = arith.addf %186, %190 : vector<2x128xf32>
    %192 = vector.extract_strided_slice %70 {offsets = [46, 0], sizes = [2, 64], strides = [1, 1]} : vector<50x64xf32> to vector<2x64xf32>
    %c23 = arith.constant 23 : index
    %c0_129 = arith.constant 0 : index
    %c0_130 = arith.constant 0 : index
    %193 = vector.load %arg12[%c23, %c0_129, %c0_130] : memref<25x64x128xf32, #tpu.memory_space<vmem>>, vector<1x64x128xf32>
    %194 = vector.shape_cast %193 : vector<1x64x128xf32> to vector<64x128xf32>
    %cst_131 = arith.constant dense<0.000000e+00> : vector<2x128xf32>
    %195 = tpu.matmul %192, %194, %cst_131 {dimension_numbers = #tpu.dot_dimension_numbers<[1], [0], [0], [1], [0, 0, 1, 1], [], []>} : vector<2x64xf32>, vector<64x128xf32>, vector<2x128xf32> -> vector<2x128xf32>
    %196 = arith.addf %191, %195 : vector<2x128xf32>
    %197 = vector.extract_strided_slice %70 {offsets = [48, 0], sizes = [2, 64], strides = [1, 1]} : vector<50x64xf32> to vector<2x64xf32>
    %c24 = arith.constant 24 : index
    %c0_132 = arith.constant 0 : index
    %c0_133 = arith.constant 0 : index
    %198 = vector.load %arg12[%c24, %c0_132, %c0_133] : memref<25x64x128xf32, #tpu.memory_space<vmem>>, vector<1x64x128xf32>
    %199 = vector.shape_cast %198 : vector<1x64x128xf32> to vector<64x128xf32>
    %cst_134 = arith.constant dense<0.000000e+00> : vector<2x128xf32>
    %200 = tpu.matmul %197, %199, %cst_134 {dimension_numbers = #tpu.dot_dimension_numbers<[1], [0], [0], [1], [0, 0, 1, 1], [], []>} : vector<2x64xf32>, vector<64x128xf32>, vector<2x128xf32> -> vector<2x128xf32>
    %201 = arith.addf %196, %200 : vector<2x128xf32>
    %202 = arith.negf %201 : vector<2x128xf32>
    %203 = math.exp %202 : vector<2x128xf32>
    %cst_135 = arith.constant 1.000000e+00 : f32
    %204 = vector.broadcast %cst_135 : f32 to vector<2x128xf32>
    %205 = arith.addf %204, %203 : vector<2x128xf32>
    %206 = arith.divf %204, %205 : vector<2x128xf32>
    %207 = math.tanh %201 : vector<2x128xf32>
    %208 = vector.extract_strided_slice %206 {offsets = [0, 0], sizes = [2, 32], strides = [1, 1]} : vector<2x128xf32> to vector<2x32xf32>
    %209 = vector.extract_strided_slice %206 {offsets = [0, 32], sizes = [2, 32], strides = [1, 1]} : vector<2x128xf32> to vector<2x32xf32>
    %210 = vector.extract_strided_slice %207 {offsets = [0, 64], sizes = [2, 32], strides = [1, 1]} : vector<2x128xf32> to vector<2x32xf32>
    %211 = vector.extract_strided_slice %206 {offsets = [0, 96], sizes = [2, 32], strides = [1, 1]} : vector<2x128xf32> to vector<2x32xf32>
    %c0_136 = arith.constant 0 : index
    %c0_137 = arith.constant 0 : index
    %212 = vector.load %arg3[%c0_136, %c0_137] : memref<2x32xf32, #tpu.memory_space<vmem>>, vector<2x32xf32>
    %213 = arith.mulf %209, %212 : vector<2x32xf32>
    %214 = arith.mulf %208, %210 : vector<2x32xf32>
    %215 = arith.addf %213, %214 : vector<2x32xf32>
    %216 = math.tanh %215 : vector<2x32xf32>
    %217 = arith.mulf %211, %216 : vector<2x32xf32>
    %c0_138 = arith.constant 0 : index
    %c0_139 = arith.constant 0 : index
    %218 = vector.load %arg15[%c0_138, %c0_139] : memref<32x9xf32, #tpu.memory_space<vmem>>, vector<32x9xf32>
    %cst_140 = arith.constant dense<0.000000e+00> : vector<2x9xf32>
    %219 = tpu.matmul %217, %218, %cst_140 {dimension_numbers = #tpu.dot_dimension_numbers<[1], [0], [0], [1], [0, 0, 1, 1], [], []>} : vector<2x32xf32>, vector<32x9xf32>, vector<2x9xf32> -> vector<2x9xf32>
    %c0_141 = arith.constant 0 : index
    %c0_142 = arith.constant 0 : index
    %220 = vector.load %arg16[%c0_141, %c0_142] : memref<1x9xf32, #tpu.memory_space<vmem>>, vector<1x9xf32>
    %221 = vector.broadcast %220 : vector<1x9xf32> to vector<2x9xf32>
    %222 = arith.addf %219, %221 : vector<2x9xf32>
    %223 = tpu.iota {dimensions = array<i32: 1>} : vector<2x9xi32>
    %c1_i32 = arith.constant 1 : i32
    %224 = vector.broadcast %c1_i32 : i32 to vector<2x9xi32>
    %225 = arith.cmpi sge, %223, %224 : vector<2x9xi32>
    %c5_i32 = arith.constant 5 : i32
    %226 = vector.broadcast %c5_i32 : i32 to vector<2x9xi32>
    %227 = arith.cmpi slt, %223, %226 : vector<2x9xi32>
    %228 = arith.andi %225, %227 : vector<2x9xi1>
    %229 = math.absf %222 : vector<2x9xf32>
    %cst_143 = arith.constant 1.000000e+00 : f32
    %230 = vector.broadcast %cst_143 : f32 to vector<2x9xf32>
    %231 = arith.addf %230, %229 : vector<2x9xf32>
    %232 = arith.divf %222, %231 : vector<2x9xf32>
    %233 = arith.select %228, %232, %222 : vector<2x9xi1>, vector<2x9xf32>
    %cst_144 = arith.constant 0.000000e+00 : f32
    %234 = vector.broadcast %cst_144 : f32 to vector<2x55xf32>
    %235 = tpu.concatenate %233, %217, %215, %234 in 1 : vector<2x9xf32>, vector<2x32xf32>, vector<2x32xf32>, vector<2x55xf32> -> vector<2x128xf32>
    %c0_145 = arith.constant 0 : index
    %c0_146 = arith.constant 0 : index
    %236 = vector.load %arg17[%c0_145, %c0_146] : memref<2x128xf32, #tpu.memory_space<vmem>>, vector<2x128xf32>
    tpu.vector_store %arg17[%c0_145, %c0_146], %235 {strides = array<i32>} : memref<2x128xf32, #tpu.memory_space<vmem>>, vector<2x128xf32>,
    return
  }
  func.func @transform_0(%arg0: i32) -> (i32, i32) {
    %c0_i32 = arith.constant 0 : i32
    %c0_i32_0 = arith.constant 0 : i32
    %c0_i32_1 = arith.constant 0 : i32
    return %c0_i32, %c0_i32_0 : i32, i32
  }
  func.func @transform_1(%arg0: i32) -> (i32, i32) {
    %c0_i32 = arith.constant 0 : i32
    %c0_i32_0 = arith.constant 0 : i32
    %c0_i32_1 = arith.constant 0 : i32
    return %c0_i32, %c0_i32_0 : i32, i32
  }
  func.func @transform_2(%arg0: i32) -> (i32, i32) {
    %c0_i32 = arith.constant 0 : i32
    %c0_i32_0 = arith.constant 0 : i32
    %c0_i32_1 = arith.constant 0 : i32
    return %c0_i32, %c0_i32_0 : i32, i32
  }
  func.func @transform_3(%arg0: i32) -> (i32, i32, i32) {
    %c0_i32 = arith.constant 0 : i32
    %c0_i32_0 = arith.constant 0 : i32
    %c0_i32_1 = arith.constant 0 : i32
    %c0_i32_2 = arith.constant 0 : i32
    return %c0_i32, %c0_i32_0, %c0_i32_1 : i32, i32, i32
  }
  func.func @transform_4(%arg0: i32) -> (i32, i32) {
    %c0_i32 = arith.constant 0 : i32
    %c0_i32_0 = arith.constant 0 : i32
    %c0_i32_1 = arith.constant 0 : i32
    return %c0_i32, %c0_i32_0 : i32, i32
  }
  func.func @transform_5(%arg0: i32) -> (i32, i32, i32) {
    %c0_i32 = arith.constant 0 : i32
    %c0_i32_0 = arith.constant 0 : i32
    %c0_i32_1 = arith.constant 0 : i32
    %c0_i32_2 = arith.constant 0 : i32
    return %c0_i32, %c0_i32_0, %c0_i32_1 : i32, i32, i32
  }
  func.func @transform_6(%arg0: i32) -> (i32, i32) {
    %c0_i32 = arith.constant 0 : i32
    %c0_i32_0 = arith.constant 0 : i32
    %c0_i32_1 = arith.constant 0 : i32
    return %c0_i32, %c0_i32_0 : i32, i32
  }
  func.func @transform_7(%arg0: i32) -> (i32, i32, i32) {
    %c0_i32 = arith.constant 0 : i32
    %c0_i32_0 = arith.constant 0 : i32
    %c0_i32_1 = arith.constant 0 : i32
    %c0_i32_2 = arith.constant 0 : i32
    return %c0_i32, %c0_i32_0, %c0_i32_1 : i32, i32, i32
  }
  func.func @transform_8(%arg0: i32) -> (i32, i32) {
    %c0_i32 = arith.constant 0 : i32
    %c0_i32_0 = arith.constant 0 : i32
    %c0_i32_1 = arith.constant 0 : i32
    return %c0_i32, %c0_i32_0 : i32, i32
  }
  func.func @transform_9(%arg0: i32) -> (i32, i32) {
    %c0_i32 = arith.constant 0 : i32
    %c0_i32_0 = arith.constant 0 : i32
    %c0_i32_1 = arith.constant 0 : i32
    return %c0_i32, %c0_i32_0 : i32, i32
  }
  func.func @transform_10(%arg0: i32) -> (i32, i32) {
    %c0_i32 = arith.constant 0 : i32
    %c0_i32_0 = arith.constant 0 : i32
    %c0_i32_1 = arith.constant 0 : i32
    return %c0_i32, %c0_i32_0 : i32, i32
  }
  func.func @transform_11(%arg0: i32) -> (i32, i32, i32) {
    %c0_i32 = arith.constant 0 : i32
    %c0_i32_0 = arith.constant 0 : i32
    %c0_i32_1 = arith.constant 0 : i32
    %c0_i32_2 = arith.constant 0 : i32
    return %c0_i32, %c0_i32_0, %c0_i32_1 : i32, i32, i32
  }
  func.func @transform_12(%arg0: i32) -> (i32, i32) {
    %c0_i32 = arith.constant 0 : i32
    %c0_i32_0 = arith.constant 0 : i32
    %c0_i32_1 = arith.constant 0 : i32
    return %c0_i32, %c0_i32_0 : i32, i32
  }
  func.func @transform_13(%arg0: i32) -> (i32, i32) {
    %c0_i32 = arith.constant 0 : i32
    %c0_i32_0 = arith.constant 0 : i32
    %c0_i32_1 = arith.constant 0 : i32
    return %c0_i32, %c0_i32_0 : i32, i32
  }
  func.func @transform_14(%arg0: i32) -> (i32, i32) {
    %c0_i32 = arith.constant 0 : i32
    %c0_i32_0 = arith.constant 0 : i32
    %c0_i32_1 = arith.constant 0 : i32
    return %c0_i32, %c0_i32_0 : i32, i32
  }
  func.func @transform_15(%arg0: i32) -> (i32, i32) {
    %c0_i32 = arith.constant 0 : i32
    %c0_i32_0 = arith.constant 0 : i32
    %c0_i32_1 = arith.constant 0 : i32
    return %c0_i32, %c0_i32_0 : i32, i32
  }
  func.func @transform_16(%arg0: i32) -> (i32, i32) {
    %c0_i32 = arith.constant 0 : i32
    %c0_i32_0 = arith.constant 0 : i32
    %c0_i32_1 = arith.constant 0 : i32
    return %c0_i32, %c0_i32_0 : i32, i32
  }
}

</mosaic_0001>

<llo_original>
// kernel: a3c_conv_forward.1
$region0: #{a3c_conv_forward.1}
  #allocation0 [shape = 'u32[]', space=smem, size = 0x4, offset = 0x4, fixed_abs, tag = 'smem constant byte address 0x4 - core index']
  #allocation1 [shape = 'u32[72,128]{1,0:T(1,128)}', space=vmem, size = 0x9000, scoped, tag = 'internal scratch']
  %s0 = inlined_call_operand.vmem [shape: f32[48,4], index: 0, kind: input, shape index: {}]
  %s1 = inlined_call_operand.vmem [shape: f32[2,32], index: 1, kind: input, shape index: {}]
  %s2 = inlined_call_operand.vmem [shape: f32[2,32], index: 2, kind: input, shape index: {}]
  %s3 = inlined_call_operand.hbm [shape: f32[3,4,32], index: 3, kind: input, shape index: {}]
  %s4 = inlined_call_operand.hbm [shape: f32[1,32], index: 4, kind: input, shape index: {}]
  %s5 = inlined_call_operand.vmem [shape: f32[3,32,32], index: 5, kind: input, shape index: {}]
  %s6 = inlined_call_operand.hbm [shape: f32[1,32], index: 6, kind: input, shape index: {}]
  %s7 = inlined_call_operand.hbm [shape: f32[2,32,64], index: 7, kind: input, shape index: {}]
  %s8 = inlined_call_operand.hbm [shape: f32[1,64], index: 8, kind: input, shape index: {}]
  %s9 = inlined_call_operand.hbm [shape: f32[64,64], index: 9, kind: input, shape index: {}]
  %s10 = inlined_call_operand.hbm [shape: f32[1,64], index: 10, kind: input, shape index: {}]
  %s11 = inlined_call_operand.hbm [shape: f32[25,64,128], index: 11, kind: input, shape index: {}]
  %s12 = inlined_call_operand.hbm [shape: f32[32,128], index: 12, kind: input, shape index: {}]
  %s13 = inlined_call_operand.hbm [shape: f32[1,128], index: 13, kind: input, shape index: {}]
  %s14 = inlined_call_operand.vmem [shape: f32[32,9], index: 14, kind: input, shape index: {}]
  %s15 = inlined_call_operand.vmem [shape: f32[1,9], index: 15, kind: input, shape index: {}]
  %s16 = inlined_call_operand.vmem [shape: f32[2,128], index: 16, kind: output, shape index: {}]
  %s17 = sld [smem:[#allocation0]]
  $region114: #{a3c_conv_forward.1} parent=0
    _
  %s19 = ssub.s32 1, %s17
  %s20 = scalar_select 0, %s19, %s17
  $region1: #{a3c_conv_forward.1} parent=0
    #allocation2 [shape = 'u8[6144]{0}', space=vmem, size = 0x1800, scoped, tag = 'input window, operand 3, single buffered']
    #allocation3 [shape = 's32[1]{0}', space=sflag, size = 0x4, scoped, tag = 'scoped memory for a3c_conv_forward.1']
    #allocation4 [shape = 'u8[512]{0}', space=vmem, size = 0x400, scoped, tag = 'input window, operand 4, single buffered']
    #allocation5 [shape = 's32[1]{0}', space=sflag, size = 0x4, scoped, tag = 'scoped memory for a3c_conv_forward.1']
    #allocation6 [shape = 'u8[512]{0}', space=vmem, size = 0x400, scoped, tag = 'input window, operand 6, single buffered']
    #allocation7 [shape = 'u8[32768]{0}', space=vmem, size = 0x8000, scoped, tag = 'input window, operand 7, single buffered']
    #allocation8 [shape = 's32[1]{0}', space=sflag, size = 0x4, scoped, tag = 'scoped memory for a3c_conv_forward.1']
    #allocation9 [shape = 'u8[512]{0}', space=vmem, size = 0x400, scoped, tag = 'input window, operand 8, single buffered']
    #allocation10 [shape = 'u8[32768]{0}', space=vmem, size = 0x8000, scoped, tag = 'input window, operand 9, single buffered']
    #allocation11 [shape = 's32[1]{0}', space=sflag, size = 0x4, scoped, tag = 'scoped memory for a3c_conv_forward.1']
    #allocation12 [shape = 'u8[512]{0}', space=vmem, size = 0x400, scoped, tag = 'input window, operand 10, single buffered']
    #allocation13 [shape = 'u8[819200]{0}', space=vmem, size = 0xc8000, scoped, tag = 'input window, operand 11, single buffered']
    #allocation14 [shape = 's32[1]{0}', space=sflag, size = 0x4, scoped, tag = 'scoped memory for a3c_conv_forward.1']
    #allocation15 [shape = 'u8[16384]{0}', space=vmem, size = 0x4000, scoped, tag = 'input window, operand 12, single buffered']
    #allocation16 [shape = 'u8[512]{0}', space=vmem, size = 0x400, scoped, tag = 'input window, operand 13, single buffered']
    #allocation17 [shape = 's32[1]{0}', space=sflag, size = 0x4, scoped, tag = 'scoped memory for a3c_conv_forward.1']
    %21 = vsyncpa [#allocation3], 0
    %22 = vsyncpa [#allocation5], 0
    %23 = vsyncpa [#allocation8], 0
    %24 = vsyncpa [#allocation11], 0
    %25 = vsyncpa [#allocation14], 0
    %26 = vsyncpa [#allocation17], 0
    // Predicated region
    $region2: #{a3c_conv_forward.1} parent=1 // pred_check
      _
    $region3: #{a3c_conv_forward.1} parent=1 // pred_check_branch
      %28 = sbr.rel (0) target = $region5
    $region4: #{a3c_conv_forward.1} parent=1 // pred_region
      _
    $region5: #{a3c_conv_forward.1} parent=1 // pred_fallthru
      _
    // Predicated region
    $region6: #{a3c_conv_forward.1} parent=1 // pred_check
      _
    $region7: #{a3c_conv_forward.1} parent=1 // pred_check_branch
      %30 = sbr.rel (0) target = $region9
    $region8: #{a3c_conv_forward.1} parent=1 // pred_region
      _
    $region9: #{a3c_conv_forward.1} parent=1 // pred_fallthru
      _
    // Predicated region
    $region10: #{a3c_conv_forward.1} parent=1 // pred_check
      _
    $region11: #{a3c_conv_forward.1} parent=1 // pred_check_branch
      %32 = sbr.rel (0) target = $region13
    $region12: #{a3c_conv_forward.1} parent=1 // pred_region
      _
    $region13: #{a3c_conv_forward.1} parent=1 // pred_fallthru
      _
    // Predicated region
    $region14: #{a3c_conv_forward.1} parent=1 // pred_check
      _
    $region15: #{a3c_conv_forward.1} parent=1 // pred_check_branch
      %34 = sbr.rel (0) target = $region17
    $region16: #{a3c_conv_forward.1} parent=1 // pred_region
      %36 = vsyncadd [#allocation3], 0
      %s37 = sshll.u32 %s3, 4
      %s38 = int_to_ptr.hbm [resolvable:$true] %s37
      %s39 = sshll.u32 [#allocation2], 4
      %s40 = int_to_ptr.vmem [resolvable:$true] %s39
      %45 = dma.hbm_to_vmem [thread:$0]  %s38, 192, %s40, [#allocation3], 64, 64, 4
    $region17: #{a3c_conv_forward.1} parent=1 // pred_fallthru
      _
    // Predicated region
    $region18: #{a3c_conv_forward.1} parent=1 // pred_check
      _
    $region19: #{a3c_conv_forward.1} parent=1 // pred_check_branch
      %47 = sbr.rel (0) target = $region21
    $region20: #{a3c_conv_forward.1} parent=1 // pred_region
      %49 = vsyncadd [#allocation5], 0
      %s51 = sshll.u32 %s4, 4
      %s52 = int_to_ptr.hbm [resolvable:$true] %s51
      %s53 = sshll.u32 [#allocation4], 4
      %s54 = int_to_ptr.vmem [resolvable:$true] %s53
      %56 = dma.hbm_to_vmem [thread:$0]  %s52, 16, %s54, [#allocation5]
    $region21: #{a3c_conv_forward.1} parent=1 // pred_fallthru
      _
    // Predicated region
    $region22: #{a3c_conv_forward.1} parent=1 // pred_check
      _
    $region23: #{a3c_conv_forward.1} parent=1 // pred_check_branch
      %58 = sbr.rel (0) target = $region25
    $region24: #{a3c_conv_forward.1} parent=1 // pred_region
      _
    $region25: #{a3c_conv_forward.1} parent=1 // pred_fallthru
      _
    // Predicated region
    $region26: #{a3c_conv_forward.1} parent=1 // pred_check
      _
    $region27: #{a3c_conv_forward.1} parent=1 // pred_check_branch
      %60 = sbr.rel (0) target = $region29
    $region28: #{a3c_conv_forward.1} parent=1 // pred_region
      %62 = vsyncadd [#allocation5], 0
      %s64 = sshll.u32 %s6, 4
      %s65 = int_to_ptr.hbm [resolvable:$true] %s64
      %s66 = sshll.u32 [#allocation6], 4
      %s67 = int_to_ptr.vmem [resolvable:$true] %s66
      %69 = dma.hbm_to_vmem [thread:$0]  %s65, 16, %s67, [#allocation5]
    $region29: #{a3c_conv_forward.1} parent=1 // pred_fallthru
      _
    // Predicated region
    $region30: #{a3c_conv_forward.1} parent=1 // pred_check
      _
    $region31: #{a3c_conv_forward.1} parent=1 // pred_check_branch
      %71 = sbr.rel (0) target = $region33
    $region32: #{a3c_conv_forward.1} parent=1 // pred_region
      %73 = vsyncadd [#allocation8], 0
      %s74 = sshll.u32 %s7, 4
      %s75 = int_to_ptr.hbm [resolvable:$true] %s74
      %s76 = sshll.u32 [#allocation7], 4
      %s77 = int_to_ptr.vmem [resolvable:$true] %s76
      %82 = dma.hbm_to_vmem [thread:$0]  %s75, 1024, %s77, [#allocation8], 128, 128, 8
    $region33: #{a3c_conv_forward.1} parent=1 // pred_fallthru
      _
    // Predicated region
    $region34: #{a3c_conv_forward.1} parent=1 // pred_check
      _
    $region35: #{a3c_conv_forward.1} parent=1 // pred_check_branch
      %84 = sbr.rel (0) target = $region37
    $region36: #{a3c_conv_forward.1} parent=1 // pred_region
      %86 = vsyncadd [#allocation8], 0
      %s88 = sshll.u32 %s8, 4
      %s89 = int_to_ptr.hbm [resolvable:$true] %s88
      %s90 = sshll.u32 [#allocation9], 4
      %s91 = int_to_ptr.vmem [resolvable:$true] %s90
      %93 = dma.hbm_to_vmem [thread:$0]  %s89, 16, %s91, [#allocation8]
    $region37: #{a3c_conv_forward.1} parent=1 // pred_fallthru
      _
    // Predicated region
    $region38: #{a3c_conv_forward.1} parent=1 // pred_check
      _
    $region39: #{a3c_conv_forward.1} parent=1 // pred_check_branch
      %95 = sbr.rel (0) target = $region41
    $region40: #{a3c_conv_forward.1} parent=1 // pred_region
      %97 = vsyncadd [#allocation11], 0
      %s98 = sshll.u32 %s9, 4
      %s99 = int_to_ptr.hbm [resolvable:$true] %s98
      %s100 = sshll.u32 [#allocation10], 4
      %s101 = int_to_ptr.vmem [resolvable:$true] %s100
      %106 = dma.hbm_to_vmem [thread:$0]  %s99, 1024, %s101, [#allocation11], 128, 128, 8
    $region41: #{a3c_conv_forward.1} parent=1 // pred_fallthru
      _
    // Predicated region
    $region42: #{a3c_conv_forward.1} parent=1 // pred_check
      _
    $region43: #{a3c_conv_forward.1} parent=1 // pred_check_branch
      %108 = sbr.rel (0) target = $region45
    $region44: #{a3c_conv_forward.1} parent=1 // pred_region
      %110 = vsyncadd [#allocation11], 0
      %s112 = sshll.u32 %s10, 4
      %s113 = int_to_ptr.hbm [resolvable:$true] %s112
      %s114 = sshll.u32 [#allocation12], 4
      %s115 = int_to_ptr.vmem [resolvable:$true] %s114
      %117 = dma.hbm_to_vmem [thread:$0]  %s113, 16, %s115, [#allocation11]
    $region45: #{a3c_conv_forward.1} parent=1 // pred_fallthru
      _
    // Predicated region
    $region46: #{a3c_conv_forward.1} parent=1 // pred_check
      _
    $region47: #{a3c_conv_forward.1} parent=1 // pred_check_branch
      %119 = sbr.rel (0) target = $region49
    $region48: #{a3c_conv_forward.1} parent=1 // pred_region
      %121 = vsyncadd [#allocation14], 0
      %s122 = sshll.u32 %s11, 4
      %s123 = int_to_ptr.hbm [resolvable:$true] %s122
      %s124 = sshll.u32 [#allocation13], 4
      %s125 = int_to_ptr.vmem [resolvable:$true] %s124
      %130 = dma.hbm_to_vmem [thread:$0]  %s123, 25600, %s125, [#allocation14], 128, 128, 8
    $region49: #{a3c_conv_forward.1} parent=1 // pred_fallthru
      _
    // Predicated region
    $region50: #{a3c_conv_forward.1} parent=1 // pred_check
      _
    $region51: #{a3c_conv_forward.1} parent=1 // pred_check_branch
      %132 = sbr.rel (0) target = $region53
    $region52: #{a3c_conv_forward.1} parent=1 // pred_region
      %134 = vsyncadd [#allocation14], 0
      %s135 = sshll.u32 %s12, 4
      %s136 = int_to_ptr.hbm [resolvable:$true] %s135
      %s137 = sshll.u32 [#allocation15], 4
      %s138 = int_to_ptr.vmem [resolvable:$true] %s137
      %143 = dma.hbm_to_vmem [thread:$0]  %s136, 512, %s138, [#allocation14], 128, 128, 8
    $region53: #{a3c_conv_forward.1} parent=1 // pred_fallthru
      _
    // Predicated region
    $region54: #{a3c_conv_forward.1} parent=1 // pred_check
      _
    $region55: #{a3c_conv_forward.1} parent=1 // pred_check_branch
      %145 = sbr.rel (0) target = $region57
    $region56: #{a3c_conv_forward.1} parent=1 // pred_region
      %147 = vsyncadd [#allocation17], 0
      %s149 = sshll.u32 %s13, 4
      %s150 = int_to_ptr.hbm [resolvable:$true] %s149
      %s151 = sshll.u32 [#allocation16], 4
      %s152 = int_to_ptr.vmem [resolvable:$true] %s151
      %154 = dma.hbm_to_vmem [thread:$0]  %s150, 16, %s152, [#allocation17]
    $region57: #{a3c_conv_forward.1} parent=1 // pred_fallthru
      _
    // Predicated region
    $region58: #{a3c_conv_forward.1} parent=1 // pred_check
      _
    $region59: #{a3c_conv_forward.1} parent=1 // pred_check_branch
      %156 = sbr.rel (0) target = $region61
    $region60: #{a3c_conv_forward.1} parent=1 // pred_region
      _
    $region61: #{a3c_conv_forward.1} parent=1 // pred_fallthru
      _
    // Predicated region
    $region62: #{a3c_conv_forward.1} parent=1 // pred_check
      _
    $region63: #{a3c_conv_forward.1} parent=1 // pred_check_branch
      %158 = sbr.rel (0) target = $region65
    $region64: #{a3c_conv_forward.1} parent=1 // pred_region
      _
    $region65: #{a3c_conv_forward.1} parent=1 // pred_fallthru
      _
    // Predicated region
    $region66: #{a3c_conv_forward.1} parent=1 // pred_check
      _
    $region67: #{a3c_conv_forward.1} parent=1 // pred_check_branch
      %160 = sbr.rel (0) target = $region69
    $region68: #{a3c_conv_forward.1} parent=1 // pred_region
      %162 = dma.done [#allocation3], 192
    $region69: #{a3c_conv_forward.1} parent=1 // pred_fallthru
      _
    // Predicated region
    $region70: #{a3c_conv_forward.1} parent=1 // pred_check
      _
    $region71: #{a3c_conv_forward.1} parent=1 // pred_check_branch
      %164 = sbr.rel (0) target = $region73
    $region72: #{a3c_conv_forward.1} parent=1 // pred_region
      %166 = dma.done [#allocation5], 16
    $region73: #{a3c_conv_forward.1} parent=1 // pred_fallthru
      _
    // Predicated region
    $region74: #{a3c_conv_forward.1} parent=1 // pred_check
      _
    $region75: #{a3c_conv_forward.1} parent=1 // pred_check_branch
      %168 = sbr.rel (0) target = $region77
    $region76: #{a3c_conv_forward.1} parent=1 // pred_region
      %170 = dma.done [#allocation5], 16
    $region77: #{a3c_conv_forward.1} parent=1 // pred_fallthru
      _
    // Predicated region
    $region78: #{a3c_conv_forward.1} parent=1 // pred_check
      _
    $region79: #{a3c_conv_forward.1} parent=1 // pred_check_branch
      %172 = sbr.rel (0) target = $region81
    $region80: #{a3c_conv_forward.1} parent=1 // pred_region
      %174 = dma.done [#allocation8], 1024
    $region81: #{a3c_conv_forward.1} parent=1 // pred_fallthru
      _
    // Predicated region
    $region82: #{a3c_conv_forward.1} parent=1 // pred_check
      _
    $region83: #{a3c_conv_forward.1} parent=1 // pred_check_branch
      %176 = sbr.rel (0) target = $region85
    $region84: #{a3c_conv_forward.1} parent=1 // pred_region
      %178 = dma.done [#allocation8], 16
    $region85: #{a3c_conv_forward.1} parent=1 // pred_fallthru
      _
    // Predicated region
    $region86: #{a3c_conv_forward.1} parent=1 // pred_check
      _
    $region87: #{a3c_conv_forward.1} parent=1 // pred_check_branch
      %180 = sbr.rel (0) target = $region89
    $region88: #{a3c_conv_forward.1} parent=1 // pred_region
      %182 = dma.done [#allocation11], 1024
    $region89: #{a3c_conv_forward.1} parent=1 // pred_fallthru
      _
    // Predicated region
    $region90: #{a3c_conv_forward.1} parent=1 // pred_check
      _
    $region91: #{a3c_conv_forward.1} parent=1 // pred_check_branch
      %184 = sbr.rel (0) target = $region93
    $region92: #{a3c_conv_forward.1} parent=1 // pred_region
      %186 = dma.done [#allocation11], 16
    $region93: #{a3c_conv_forward.1} parent=1 // pred_fallthru
      _
    // Predicated region
    $region94: #{a3c_conv_forward.1} parent=1 // pred_check
      _
    $region95: #{a3c_conv_forward.1} parent=1 // pred_check_branch
      %188 = sbr.rel (0) target = $region97
    $region96: #{a3c_conv_forward.1} parent=1 // pred_region
      %190 = dma.done [#allocation14], 25600
    $region97: #{a3c_conv_forward.1} parent=1 // pred_fallthru
      _
    // Predicated region
    $region98: #{a3c_conv_forward.1} parent=1 // pred_check
      _
    $region99: #{a3c_conv_forward.1} parent=1 // pred_check_branch
      %192 = sbr.rel (0) target = $region101
    $region100: #{a3c_conv_forward.1} parent=1 // pred_region
      %194 = dma.done [#allocation14], 512
    $region101: #{a3c_conv_forward.1} parent=1 // pred_fallthru
      _
    // Predicated region
    $region102: #{a3c_conv_forward.1} parent=1 // pred_check
      _
    $region103: #{a3c_conv_forward.1} parent=1 // pred_check_branch
      %196 = sbr.rel (0) target = $region105
    $region104: #{a3c_conv_forward.1} parent=1 // pred_region
      %198 = dma.done [#allocation17], 16
    $region105: #{a3c_conv_forward.1} parent=1 // pred_fallthru
      _
    %v199 = vld [vmem:[%s0] sm:$0xff]
    %v200 = vld [vmem:[%s0 + $0x8] sm:$0xff]
    %v201 = vld [vmem:[%s0 + $0x10] sm:$0xff]
    %v202 = vld [vmem:[%s0 + $0x18] sm:$0xff]
    %v203 = vld [vmem:[%s0 + $0x20] sm:$0xff]
    %v204 = vld [vmem:[%s0 + $0x28] sm:$0xff]
    %vm211 = vcmask 1041408
    %v212 = vrot.slane %v199, 6
    %v213 = vrot.slane %v200, 6
    %v214 = vsel %vm211, %v212, %v213
    %v215 = vrot.slane %v201, 6
    %v216 = vsel %vm211, %v213, %v215
    %v217 = vrot.slane %v202, 6
    %v218 = vsel %vm211, %v215, %v217
    %v219 = vrot.slane %v203, 6
    %v220 = vsel %vm211, %v217, %v219
    %v221 = vrot.slane %v204, 6
    %v222 = vsel %vm211, %v219, %v221
    %v224 = vsel %vm211, 0.0, %v212
    %v225 = vld [vmem:[#allocation2] sm:$0xf]
    %s226 = scalar_lea.vmem [#allocation2], 4
    %v227 = vld [vmem:[%s226] sm:$0xf]
    %vm228 = vcmask 31744
    %v229 = vsel %vm228, %v199, 0
    %v231 = vsel %vm228, %v200, 0
    %v233 = vsel %vm228, %v201, 0
    %v235 = vsel %vm228, %v202, 0
    %v237 = vsel %vm228, %v203, 0
    %v239 = vsel %vm228, %v204, 0
    %vm241 = vcmask 1043456
    %v243 = vsel %vm241, %v227, 0
    %245 = vmatpush.msra.mxu0 0.0
    %246 = vmatpush.msra.mxu0 0.0
    %247 = vmatpush.msra.mxu0 0.0
    %248 = vmatpush.msra.mxu0 0.0
    %249 = vmatpush.msra.mxu0 0.0
    %250 = vmatpush.msra.mxu0 0.0
    %251 = vmatpush.msra.mxu0 0.0
    %252 = vmatpush.msra.mxu0 0.0
    %253 = vmatpush.msra.mxu0 0.0
    %254 = vmatpush.msra.mxu0 0.0
    %255 = vmatpush.msra.mxu0 0.0
    %256 = vmatpush.msra.mxu0 0.0
    %257 = vmatpush.msra.mxu0 0.0
    %258 = vmatpush.msra.mxu0 0.0
    %259 = vmatpush.msra.mxu0 0.0
    %260 = vmatpush.msra.mxu0 %v243
    %261 = vmatmul.f32.gmra.mxu0 %v229
    %v262 = vpop.f32.mrf.mxu0
    %v263 = vadd.f32 0.0, %v262
    %264 = vmatmul.f32.gmra.mxu0 %v231
    %v265 = vpop.f32.mrf.mxu0
    %v266 = vadd.f32 0.0, %v265
    %267 = vmatmul.f32.gmra.mxu0 %v233
    %v268 = vpop.f32.mrf.mxu0
    %v269 = vadd.f32 0.0, %v268
    %270 = vmatmul.f32.gmra.mxu0 %v235
    %v271 = vpop.f32.mrf.mxu0
    %v272 = vadd.f32 0.0, %v271
    %273 = vmatmul.f32.gmra.mxu0 %v237
    %v274 = vpop.f32.mrf.mxu0
    %v275 = vadd.f32 0.0, %v274
    %276 = vmatmul.f32.gmra.mxu0 %v239
    %v277 = vpop.f32.mrf.mxu0
    %v278 = vadd.f32 0.0, %v277
    %279 = vdwg.mxu0
    %v281 = vsel %vm228, %v224, 0
    %v283 = vsel %vm228, %v214, 0
    %v285 = vsel %vm228, %v216, 0
    %v287 = vsel %vm228, %v218, 0
    %v289 = vsel %vm228, %v220, 0
    %v291 = vsel %vm228, %v222, 0
    %v294 = vsel %vm241, %v225, 0
    %296 = vmatpush.msra.mxu0 0.0
    %297 = vmatpush.msra.mxu0 0.0
    %298 = vmatpush.msra.mxu0 0.0
    %299 = vmatpush.msra.mxu0 0.0
    %300 = vmatpush.msra.mxu0 0.0
    %301 = vmatpush.msra.mxu0 0.0
    %302 = vmatpush.msra.mxu0 0.0
    %303 = vmatpush.msra.mxu0 0.0
    %304 = vmatpush.msra.mxu0 0.0
    %305 = vmatpush.msra.mxu0 0.0
    %306 = vmatpush.msra.mxu0 0.0
    %307 = vmatpush.msra.mxu0 0.0
    %308 = vmatpush.msra.mxu0 0.0
    %309 = vmatpush.msra.mxu0 0.0
    %310 = vmatpush.msra.mxu0 0.0
    %311 = vmatpush.msra.mxu0 %v294
    %312 = vmatmul.f32.gmra.mxu0 %v281
    %v313 = vpop.f32.mrf.mxu0
    %v314 = vadd.f32 %v263, %v313
    %315 = vmatmul.f32.gmra.mxu0 %v283
    %v316 = vpop.f32.mrf.mxu0
    %v317 = vadd.f32 %v266, %v316
    %318 = vmatmul.f32.gmra.mxu0 %v285
    %v319 = vpop.f32.mrf.mxu0
    %v320 = vadd.f32 %v269, %v319
    %321 = vmatmul.f32.gmra.mxu0 %v287
    %v322 = vpop.f32.mrf.mxu0
    %v323 = vadd.f32 %v272, %v322
    %324 = vmatmul.f32.gmra.mxu0 %v289
    %v325 = vpop.f32.mrf.mxu0
    %v326 = vadd.f32 %v275, %v325
    %327 = vmatmul.f32.gmra.mxu0 %v291
    %v328 = vpop.f32.mrf.mxu0
    %v329 = vadd.f32 %v278, %v328
    %330 = vdwg.mxu0
    %vm331 = vcmask 1045504
    %v332 = vrot.slane %v199, 2
    %v333 = vrot.slane %v200, 2
    %v334 = vsel %vm331, %v332, %v333
    %v335 = vrot.slane %v201, 2
    %v336 = vsel %vm331, %v333, %v335
    %v337 = vrot.slane %v202, 2
    %v338 = vsel %vm331, %v335, %v337
    %v339 = vrot.slane %v203, 2
    %v340 = vsel %vm331, %v337, %v339
    %v341 = vrot.slane %v204, 2
    %v342 = vsel %vm331, %v339, %v341
    %v344 = vsel %vm331, %v341, 0.0
    %s345 = scalar_lea.vmem [#allocation2], 8
    %v346 = vld [vmem:[%s345] sm:$0xf]
    %v347 = vsel %vm228, %v334, 0
    %v349 = vsel %vm228, %v336, 0
    %v351 = vsel %vm228, %v338, 0
    %v353 = vsel %vm228, %v340, 0
    %v355 = vsel %vm228, %v342, 0
    %v358 = vsel %vm228, %v344, 0
    %v361 = vsel %vm241, %v346, 0
    %363 = vmatpush.msra.mxu0 0.0
    %364 = vmatpush.msra.mxu0 0.0
    %365 = vmatpush.msra.mxu0 0.0
    %366 = vmatpush.msra.mxu0 0.0
    %367 = vmatpush.msra.mxu0 0.0
    %368 = vmatpush.msra.mxu0 0.0
    %369 = vmatpush.msra.mxu0 0.0
    %370 = vmatpush.msra.mxu0 0.0
    %371 = vmatpush.msra.mxu0 0.0
    %372 = vmatpush.msra.mxu0 0.0
    %373 = vmatpush.msra.mxu0 0.0
    %374 = vmatpush.msra.mxu0 0.0
    %375 = vmatpush.msra.mxu0 0.0
    %376 = vmatpush.msra.mxu0 0.0
    %377 = vmatpush.msra.mxu0 0.0
    %378 = vmatpush.msra.mxu0 %v361
    %379 = vmatmul.f32.gmra.mxu0 %v347
    %v380 = vpop.f32.mrf.mxu0
    %v381 = vadd.f32 0.0, %v380
    %382 = vmatmul.f32.gmra.mxu0 %v349
    %v383 = vpop.f32.mrf.mxu0
    %v384 = vadd.f32 0.0, %v383
    %385 = vmatmul.f32.gmra.mxu0 %v351
    %v386 = vpop.f32.mrf.mxu0
    %v387 = vadd.f32 0.0, %v386
    %388 = vmatmul.f32.gmra.mxu0 %v353
    %v389 = vpop.f32.mrf.mxu0
    %v390 = vadd.f32 0.0, %v389
    %391 = vmatmul.f32.gmra.mxu0 %v355
    %v392 = vpop.f32.mrf.mxu0
    %v393 = vadd.f32 0.0, %v392
    %394 = vmatmul.f32.gmra.mxu0 %v358
    %v395 = vpop.f32.mrf.mxu0
    %v396 = vadd.f32 0.0, %v395
    %397 = vdwg.mxu0
    %v398 = vadd.f32 %v314, %v381
    %v399 = vadd.f32 %v317, %v384
    %v400 = vadd.f32 %v320, %v387
    %v401 = vadd.f32 %v323, %v390
    %v402 = vadd.f32 %v326, %v393
    %v403 = vadd.f32 %v329, %v396
    %v404 = vld [vmem:[#allocation4] sm:$0x1]
    %v406 = vperm.slane %v404, 0
    %v408 = vadd.f32 %v398, %v406
    %v409 = vadd.f32 %v399, %v406
    %v410 = vadd.f32 %v400, %v406
    %v411 = vadd.f32 %v401, %v406
    %v412 = vadd.f32 %v402, %v406
    %v413 = vadd.f32 %v403, %v406
    %v414 = vmul.f32 %v408, 0.1
    %v415 = vmul.f32 %v409, 0.1
    %v416 = vmul.f32 %v410, 0.1
    %v417 = vmul.f32 %v411, 0.1
    %v418 = vmul.f32 %v412, 0.1
    %v419 = vmul.f32 %v413, 0.1
    %v420 = vmax.f32 %v408, %v414
    %v421 = vmax.f32 %v409, %v415
    %v422 = vmax.f32 %v410, %v416
    %v423 = vmax.f32 %v411, %v417
    %v424 = vmax.f32 %v412, %v418
    %v425 = vmax.f32 %v413, %v419
    %v432 = vrot.slane %v420, 6
    %v433 = vrot.slane %v421, 6
    %v434 = vsel %vm211, %v432, %v433
    %v435 = vrot.slane %v422, 6
    %v436 = vsel %vm211, %v433, %v435
    %v437 = vrot.slane %v423, 6
    %v438 = vsel %vm211, %v435, %v437
    %v439 = vrot.slane %v424, 6
    %v440 = vsel %vm211, %v437, %v439
    %v441 = vrot.slane %v425, 6
    %v442 = vsel %vm211, %v439, %v441
    %v444 = vsel %vm211, 0.0, %v432
    %v445 = vld [vmem:[%s5] sm:$0xff]
    %v446 = vld [vmem:[%s5 + $0x8] sm:$0xff]
    %v447 = vld [vmem:[%s5 + $0x10] sm:$0xff]
    %v448 = vld [vmem:[%s5 + $0x18] sm:$0xff]
    %s449 = scalar_lea.vmem %s5, 32
    %v450 = vld [vmem:[%s449] sm:$0xff]
    %v451 = vld [vmem:[%s449 + $0x8] sm:$0xff]
    %v452 = vld [vmem:[%s449 + $0x10] sm:$0xff]
    %v453 = vld [vmem:[%s449 + $0x18] sm:$0xff]
    %vm454 = vcmask 261120
    %v455 = vsel %vm454, %v420, 0
    %v457 = vsel %vm454, %v421, 0
    %v459 = vsel %vm454, %v422, 0
    %v461 = vsel %vm454, %v423, 0
    %v463 = vsel %vm454, %v424, 0
    %v465 = vsel %vm454, %v425, 0
    %467 = vmatpush.msra.mxu0 0.0
    %468 = vmatpush.msra.mxu0 0.0
    %469 = vmatpush.msra.mxu0 0.0
    %470 = vmatpush.msra.mxu0 0.0
    %471 = vmatpush.msra.mxu0 0.0
    %472 = vmatpush.msra.mxu0 0.0
    %473 = vmatpush.msra.mxu0 0.0
    %474 = vmatpush.msra.mxu0 0.0
    %475 = vmatpush.msra.mxu0 0.0
    %476 = vmatpush.msra.mxu0 0.0
    %477 = vmatpush.msra.mxu0 0.0
    %478 = vmatpush.msra.mxu0 0.0
    %479 = vmatpush.msra.mxu0 %v453
    %480 = vmatpush.msra.mxu0 %v452
    %481 = vmatpush.msra.mxu0 %v451
    %482 = vmatpush.msra.mxu0 %v450
    %483 = vmatmul.f32.gmra.mxu0 %v455
    %v484 = vpop.f32.mrf.mxu0
    %v485 = vadd.f32 0.0, %v484
    %486 = vmatmul.f32.gmra.mxu0 %v457
    %v487 = vpop.f32.mrf.mxu0
    %v488 = vadd.f32 0.0, %v487
    %489 = vmatmul.f32.gmra.mxu0 %v459
    %v490 = vpop.f32.mrf.mxu0
    %v491 = vadd.f32 0.0, %v490
    %492 = vmatmul.f32.gmra.mxu0 %v461
    %v493 = vpop.f32.mrf.mxu0
    %v494 = vadd.f32 0.0, %v493
    %495 = vmatmul.f32.gmra.mxu0 %v463
    %v496 = vpop.f32.mrf.mxu0
    %v497 = vadd.f32 0.0, %v496
    %498 = vmatmul.f32.gmra.mxu0 %v465
    %v499 = vpop.f32.mrf.mxu0
    %v500 = vadd.f32 0.0, %v499
    %501 = vdwg.mxu0
    %v503 = vsel %vm454, %v444, 0
    %v505 = vsel %vm454, %v434, 0
    %v507 = vsel %vm454, %v436, 0
    %v509 = vsel %vm454, %v438, 0
    %v511 = vsel %vm454, %v440, 0
    %v513 = vsel %vm454, %v442, 0
    %515 = vmatpush.msra.mxu0 0.0
    %516 = vmatpush.msra.mxu0 0.0
    %517 = vmatpush.msra.mxu0 0.0
    %518 = vmatpush.msra.mxu0 0.0
    %519 = vmatpush.msra.mxu0 0.0
    %520 = vmatpush.msra.mxu0 0.0
    %521 = vmatpush.msra.mxu0 0.0
    %522 = vmatpush.msra.mxu0 0.0
    %523 = vmatpush.msra.mxu0 0.0
    %524 = vmatpush.msra.mxu0 0.0
    %525 = vmatpush.msra.mxu0 0.0
    %526 = vmatpush.msra.mxu0 0.0
    %527 = vmatpush.msra.mxu0 %v448
    %528 = vmatpush.msra.mxu0 %v447
    %529 = vmatpush.msra.mxu0 %v446
    %530 = vmatpush.msra.mxu0 %v445
    %531 = vmatmul.f32.gmra.mxu0 %v503
    %v532 = vpop.f32.mrf.mxu0
    %v533 = vadd.f32 %v485, %v532
    %534 = vmatmul.f32.gmra.mxu0 %v505
    %v535 = vpop.f32.mrf.mxu0
    %v536 = vadd.f32 %v488, %v535
    %537 = vmatmul.f32.gmra.mxu0 %v507
    %v538 = vpop.f32.mrf.mxu0
    %v539 = vadd.f32 %v491, %v538
    %540 = vmatmul.f32.gmra.mxu0 %v509
    %v541 = vpop.f32.mrf.mxu0
    %v542 = vadd.f32 %v494, %v541
    %543 = vmatmul.f32.gmra.mxu0 %v511
    %v544 = vpop.f32.mrf.mxu0
    %v545 = vadd.f32 %v497, %v544
    %546 = vmatmul.f32.gmra.mxu0 %v513
    %v547 = vpop.f32.mrf.mxu0
    %v548 = vadd.f32 %v500, %v547
    %549 = vdwg.mxu0
    %v550 = vrot.slane %v420, 2
    %v551 = vrot.slane %v421, 2
    %v552 = vsel %vm331, %v550, %v551
    %v553 = vrot.slane %v422, 2
    %v554 = vsel %vm331, %v551, %v553
    %v555 = vrot.slane %v423, 2
    %v556 = vsel %vm331, %v553, %v555
    %v557 = vrot.slane %v424, 2
    %v558 = vsel %vm331, %v555, %v557
    %v559 = vrot.slane %v425, 2
    %v560 = vsel %vm331, %v557, %v559
    %v562 = vsel %vm331, %v559, 0.0
    %s563 = scalar_lea.vmem %s5, 64
    %v564 = vld [vmem:[%s563] sm:$0xff]
    %v565 = vld [vmem:[%s563 + $0x8] sm:$0xff]
    %v566 = vld [vmem:[%s563 + $0x10] sm:$0xff]
    %v567 = vld [vmem:[%s563 + $0x18] sm:$0xff]
    %v568 = vsel %vm454, %v552, 0
    %v570 = vsel %vm454, %v554, 0
    %v572 = vsel %vm454, %v556, 0
    %v574 = vsel %vm454, %v558, 0
    %v576 = vsel %vm454, %v560, 0
    %v579 = vsel %vm454, %v562, 0
    %581 = vmatpush.msra.mxu0 0.0
    %582 = vmatpush.msra.mxu0 0.0
    %583 = vmatpush.msra.mxu0 0.0
    %584 = vmatpush.msra.mxu0 0.0
    %585 = vmatpush.msra.mxu0 0.0
    %586 = vmatpush.msra.mxu0 0.0
    %587 = vmatpush.msra.mxu0 0.0
    %588 = vmatpush.msra.mxu0 0.0
    %589 = vmatpush.msra.mxu0 0.0
    %590 = vmatpush.msra.mxu0 0.0
    %591 = vmatpush.msra.mxu0 0.0
    %592 = vmatpush.msra.mxu0 0.0
    %593 = vmatpush.msra.mxu0 %v567
    %594 = vmatpush.msra.mxu0 %v566
    %595 = vmatpush.msra.mxu0 %v565
    %596 = vmatpush.msra.mxu0 %v564
    %597 = vmatmul.f32.gmra.mxu0 %v568
    %v598 = vpop.f32.mrf.mxu0
    %v599 = vadd.f32 0.0, %v598
    %600 = vmatmul.f32.gmra.mxu0 %v570
    %v601 = vpop.f32.mrf.mxu0
    %v602 = vadd.f32 0.0, %v601
    %603 = vmatmul.f32.gmra.mxu0 %v572
    %v604 = vpop.f32.mrf.mxu0
    %v605 = vadd.f32 0.0, %v604
    %606 = vmatmul.f32.gmra.mxu0 %v574
    %v607 = vpop.f32.mrf.mxu0
    %v608 = vadd.f32 0.0, %v607
    %609 = vmatmul.f32.gmra.mxu0 %v576
    %v610 = vpop.f32.mrf.mxu0
    %v611 = vadd.f32 0.0, %v610
    %612 = vmatmul.f32.gmra.mxu0 %v579
    %v613 = vpop.f32.mrf.mxu0
    %v614 = vadd.f32 0.0, %v613
    %615 = vdwg.mxu0
    %v616 = vadd.f32 %v533, %v599
    %v617 = vadd.f32 %v536, %v602
    %v618 = vadd.f32 %v539, %v605
    %v619 = vadd.f32 %v542, %v608
    %v620 = vadd.f32 %v545, %v611
    %v621 = vadd.f32 %v548, %v614
    %v622 = vld [vmem:[#allocation6] sm:$0x1]
    %v624 = vperm.slane %v622, 0
    %v626 = vadd.f32 %v616, %v624
    %v627 = vadd.f32 %v617, %v624
    %v628 = vadd.f32 %v618, %v624
    %v629 = vadd.f32 %v619, %v624
    %v630 = vadd.f32 %v620, %v624
    %v631 = vadd.f32 %v621, %v624
    %v632 = vmul.f32 %v626, 0.1
    %v633 = vmul.f32 %v627, 0.1
    %v634 = vmul.f32 %v628, 0.1
    %v635 = vmul.f32 %v629, 0.1
    %v636 = vmul.f32 %v630, 0.1
    %v637 = vmul.f32 %v631, 0.1
    %v638 = vmax.f32 %v626, %v632
    %v639 = vmax.f32 %v627, %v633
    %v640 = vmax.f32 %v628, %v634
    %v641 = vmax.f32 %v629, %v635
    %v642 = vmax.f32 %v630, %v636
    %v643 = vmax.f32 %v631, %v637
    %v650 = vrot.slane %v638, 6
    %v651 = vrot.slane %v639, 6
    %v652 = vsel %vm211, %v650, %v651
    %v653 = vrot.slane %v640, 6
    %v654 = vsel %vm211, %v651, %v653
    %v655 = vrot.slane %v641, 6
    %v656 = vsel %vm211, %v653, %v655
    %v657 = vrot.slane %v642, 6
    %v658 = vsel %vm211, %v655, %v657
    %v659 = vrot.slane %v643, 6
    %v660 = vsel %vm211, %v657, %v659
    %v662 = vsel %vm211, 0.0, %v650
    %v663 = vld [vmem:[#allocation7] sm:$0xff]
    %v664 = vld [vmem:[#allocation7 + $0x8] sm:$0xff]
    %v665 = vld [vmem:[#allocation7 + $0x10] sm:$0xff]
    %v666 = vld [vmem:[#allocation7 + $0x18] sm:$0xff]
    %s667 = scalar_lea.vmem [#allocation7], 32
    %v668 = vld [vmem:[%s667] sm:$0xff]
    %v669 = vld [vmem:[%s667 + $0x8] sm:$0xff]
    %v670 = vld [vmem:[%s667 + $0x10] sm:$0xff]
    %v671 = vld [vmem:[%s667 + $0x18] sm:$0xff]
    %v672 = vsel %vm454, %v638, 0
    %v674 = vsel %vm454, %v639, 0
    %v676 = vsel %vm454, %v640, 0
    %v678 = vsel %vm454, %v641, 0
    %v680 = vsel %vm454, %v642, 0
    %v682 = vsel %vm454, %v643, 0
    %v685 = vsel %vm454, 0.0, 0
    %687 = vmatpush.msra.mxu0 0.0
    %688 = vmatpush.msra.mxu0 0.0
    %689 = vmatpush.msra.mxu0 0.0
    %690 = vmatpush.msra.mxu0 0.0
    %691 = vmatpush.msra.mxu0 0.0
    %692 = vmatpush.msra.mxu0 0.0
    %693 = vmatpush.msra.mxu0 0.0
    %694 = vmatpush.msra.mxu0 0.0
    %695 = vmatpush.msra.mxu0 0.0
    %696 = vmatpush.msra.mxu0 0.0
    %697 = vmatpush.msra.mxu0 0.0
    %698 = vmatpush.msra.mxu0 0.0
    %699 = vmatpush.msra.mxu0 %v671
    %700 = vmatpush.msra.mxu0 %v670
    %701 = vmatpush.msra.mxu0 %v669
    %702 = vmatpush.msra.mxu0 %v668
    %703 = vmatmul.f32.gmra.mxu0 %v672
    %v704 = vpop.f32.mrf.mxu0
    %v705 = vadd.f32 0.0, %v704
    %706 = vmatmul.f32.gmra.mxu0 %v674
    %v707 = vpop.f32.mrf.mxu0
    %v708 = vadd.f32 0.0, %v707
    %709 = vmatmul.f32.gmra.mxu0 %v676
    %v710 = vpop.f32.mrf.mxu0
    %v711 = vadd.f32 0.0, %v710
    %712 = vmatmul.f32.gmra.mxu0 %v678
    %v713 = vpop.f32.mrf.mxu0
    %v714 = vadd.f32 0.0, %v713
    %715 = vmatmul.f32.gmra.mxu0 %v680
    %v716 = vpop.f32.mrf.mxu0
    %v717 = vadd.f32 0.0, %v716
    %718 = vmatmul.f32.gmra.mxu0 %v682
    %v719 = vpop.f32.mrf.mxu0
    %v720 = vadd.f32 0.0, %v719
    %721 = vmatmul.f32.gmra.mxu0 %v685
    %v722 = vpop.f32.mrf.mxu0
    %v723 = vadd.f32 0.0, %v722
    %724 = vdwg.mxu0
    %v726 = vsel %vm454, %v662, 0
    %v728 = vsel %vm454, %v652, 0
    %v730 = vsel %vm454, %v654, 0
    %v732 = vsel %vm454, %v656, 0
    %v734 = vsel %vm454, %v658, 0
    %v736 = vsel %vm454, %v660, 0
    %v738 = vsel %vm454, %v659, 0
    %740 = vmatpush.msra.mxu0 0.0
    %741 = vmatpush.msra.mxu0 0.0
    %742 = vmatpush.msra.mxu0 0.0
    %743 = vmatpush.msra.mxu0 0.0
    %744 = vmatpush.msra.mxu0 0.0
    %745 = vmatpush.msra.mxu0 0.0
    %746 = vmatpush.msra.mxu0 0.0
    %747 = vmatpush.msra.mxu0 0.0
    %748 = vmatpush.msra.mxu0 0.0
    %749 = vmatpush.msra.mxu0 0.0
    %750 = vmatpush.msra.mxu0 0.0
    %751 = vmatpush.msra.mxu0 0.0
    %752 = vmatpush.msra.mxu0 %v666
    %753 = vmatpush.msra.mxu0 %v665
    %754 = vmatpush.msra.mxu0 %v664
    %755 = vmatpush.msra.mxu0 %v663
    %756 = vmatmul.f32.gmra.mxu0 %v726
    %v757 = vpop.f32.mrf.mxu0
    %v758 = vadd.f32 %v705, %v757
    %759 = vmatmul.f32.gmra.mxu0 %v728
    %v760 = vpop.f32.mrf.mxu0
    %v761 = vadd.f32 %v708, %v760
    %762 = vmatmul.f32.gmra.mxu0 %v730
    %v763 = vpop.f32.mrf.mxu0
    %v764 = vadd.f32 %v711, %v763
    %765 = vmatmul.f32.gmra.mxu0 %v732
    %v766 = vpop.f32.mrf.mxu0
    %v767 = vadd.f32 %v714, %v766
    %768 = vmatmul.f32.gmra.mxu0 %v734
    %v769 = vpop.f32.mrf.mxu0
    %v770 = vadd.f32 %v717, %v769
    %771 = vmatmul.f32.gmra.mxu0 %v736
    %v772 = vpop.f32.mrf.mxu0
    %v773 = vadd.f32 %v720, %v772
    %774 = vmatmul.f32.gmra.mxu0 %v738
    %v775 = vpop.f32.mrf.mxu0
    %v776 = vadd.f32 %v723, %v775
    %777 = vdwg.mxu0
    %v778 = vld [vmem:[#allocation9] sm:$0x1]
    %v780 = vperm.slane %v778, 0
    %v782 = vadd.f32 %v758, %v780
    %v783 = vadd.f32 %v761, %v780
    %v784 = vadd.f32 %v764, %v780
    %v785 = vadd.f32 %v767, %v780
    %v786 = vadd.f32 %v770, %v780
    %v787 = vadd.f32 %v773, %v780
    %v788 = vadd.f32 %v776, %v780
    %v789 = vmul.f32 %v782, 0.1
    %v790 = vmul.f32 %v783, 0.1
    %v791 = vmul.f32 %v784, 0.1
    %v792 = vmul.f32 %v785, 0.1
    %v793 = vmul.f32 %v786, 0.1
    %v794 = vmul.f32 %v787, 0.1
    %v795 = vmul.f32 %v788, 0.1
    %v796 = vmax.f32 %v782, %v789
    %v797 = vmax.f32 %v783, %v790
    %v798 = vmax.f32 %v784, %v791
    %v799 = vmax.f32 %v785, %v792
    %v800 = vmax.f32 %v786, %v793
    %v801 = vmax.f32 %v787, %v794
    %v802 = vmax.f32 %v788, %v795
    %v803 = vld [vmem:[#allocation10] sm:$0xff]
    %v804 = vld [vmem:[#allocation10 + $0x8] sm:$0xff]
    %v805 = vld [vmem:[#allocation10 + $0x10] sm:$0xff]
    %v806 = vld [vmem:[#allocation10 + $0x18] sm:$0xff]
    %v807 = vld [vmem:[#allocation10 + $0x20] sm:$0xff]
    %v808 = vld [vmem:[#allocation10 + $0x28] sm:$0xff]
    %v809 = vld [vmem:[#allocation10 + $0x30] sm:$0xff]
    %v810 = vld [vmem:[#allocation10 + $0x38] sm:$0xff]
    %v811 = vld [vmem:[#allocation12] sm:$0x1]
    %v813 = vperm.slane %v811, 0
    %vm815 = vcmask 523264
    %v817 = vsel %vm815, %v796, 0
    %v820 = vsel %vm815, %v797, 0
    %v823 = vsel %vm815, %v798, 0
    %v826 = vsel %vm815, %v799, 0
    %v829 = vsel %vm815, %v800, 0
    %v832 = vsel %vm815, %v801, 0
    %v835 = vsel %vm815, %v802, 0
    %837 = vmatpush.msra.mxu0 0.0
    %838 = vmatpush.msra.mxu0 0.0
    %839 = vmatpush.msra.mxu0 0.0
    %840 = vmatpush.msra.mxu0 0.0
    %841 = vmatpush.msra.mxu0 0.0
    %842 = vmatpush.msra.mxu0 0.0
    %843 = vmatpush.msra.mxu0 0.0
    %844 = vmatpush.msra.mxu0 0.0
    %845 = vmatpush.msra.mxu0 %v810
    %846 = vmatpush.msra.mxu0 %v809
    %847 = vmatpush.msra.mxu0 %v808
    %848 = vmatpush.msra.mxu0 %v807
    %849 = vmatpush.msra.mxu0 %v806
    %850 = vmatpush.msra.mxu0 %v805
    %851 = vmatpush.msra.mxu0 %v804
    %852 = vmatpush.msra.mxu0 %v803
    %853 = vmatmul.f32.gmra.mxu0 %v817
    %v854 = vpop.f32.mrf.mxu0
    %v855 = vadd.f32 %v813, %v854
    %856 = vmatmul.f32.gmra.mxu0 %v820
    %v857 = vpop.f32.mrf.mxu0
    %v858 = vadd.f32 %v813, %v857
    %859 = vmatmul.f32.gmra.mxu0 %v823
    %v860 = vpop.f32.mrf.mxu0
    %v861 = vadd.f32 %v813, %v860
    %862 = vmatmul.f32.gmra.mxu0 %v826
    %v863 = vpop.f32.mrf.mxu0
    %v864 = vadd.f32 %v813, %v863
    %865 = vmatmul.f32.gmra.mxu0 %v829
    %v866 = vpop.f32.mrf.mxu0
    %v867 = vadd.f32 %v813, %v866
    %868 = vmatmul.f32.gmra.mxu0 %v832
    %v869 = vpop.f32.mrf.mxu0
    %v870 = vadd.f32 %v813, %v869
    %871 = vmatmul.f32.gmra.mxu0 %v835
    %v872 = vpop.f32.mrf.mxu0
    %v873 = vadd.f32 %v813, %v872
    %874 = vdwg.mxu0
    %v875 = vmul.f32 %v855, 0.1
    %v876 = vmul.f32 %v858, 0.1
    %v877 = vmul.f32 %v861, 0.1
    %v878 = vmul.f32 %v864, 0.1
    %v879 = vmul.f32 %v867, 0.1
    %v880 = vmul.f32 %v870, 0.1
    %v881 = vmul.f32 %v873, 0.1
    %v882 = vmax.f32 %v855, %v875
    %v883 = vmax.f32 %v858, %v876
    %v884 = vmax.f32 %v861, %v877
    %v885 = vmax.f32 %v864, %v878
    %v886 = vmax.f32 %v867, %v879
    %v887 = vmax.f32 %v870, %v880
    %v888 = vmax.f32 %v873, %v881
    %v889 = vld [vmem:[%s1] sm:$0x3]
    %v890 = vld [vmem:[#allocation15] sm:$0xff]
    %v891 = vld [vmem:[#allocation15 + $0x8] sm:$0xff]
    %v892 = vld [vmem:[#allocation15 + $0x10] sm:$0xff]
    %v893 = vld [vmem:[#allocation15 + $0x18] sm:$0xff]
    %v894 = vld [vmem:[#allocation16] sm:$0x1]
    %v896 = vperm.slane %v894, 0
    %v899 = vsel %vm454, %v889, 0
    %901 = vmatpush.msra.mxu0 0.0
    %902 = vmatpush.msra.mxu0 0.0
    %903 = vmatpush.msra.mxu0 0.0
    %904 = vmatpush.msra.mxu0 0.0
    %905 = vmatpush.msra.mxu0 0.0
    %906 = vmatpush.msra.mxu0 0.0
    %907 = vmatpush.msra.mxu0 0.0
    %908 = vmatpush.msra.mxu0 0.0
    %909 = vmatpush.msra.mxu0 0.0
    %910 = vmatpush.msra.mxu0 0.0
    %911 = vmatpush.msra.mxu0 0.0
    %912 = vmatpush.msra.mxu0 0.0
    %913 = vmatpush.msra.mxu0 %v893
    %914 = vmatpush.msra.mxu0 %v892
    %915 = vmatpush.msra.mxu0 %v891
    %916 = vmatpush.msra.mxu0 %v890
    %917 = vmatmul.f32.gmra.mxu0 %v899
    %v918 = vpop.f32.mrf.mxu0
    %v919 = vadd.f32 %v896, %v918
    %920 = vdwg.mxu0
    %v921 = vld [vmem:[#allocation13] sm:$0xff]
    %v922 = vld [vmem:[#allocation13 + $0x8] sm:$0xff]
    %v923 = vld [vmem:[#allocation13 + $0x10] sm:$0xff]
    %v924 = vld [vmem:[#allocation13 + $0x18] sm:$0xff]
    %v925 = vld [vmem:[#allocation13 + $0x20] sm:$0xff]
    %v926 = vld [vmem:[#allocation13 + $0x28] sm:$0xff]
    %v927 = vld [vmem:[#allocation13 + $0x30] sm:$0xff]
    %v928 = vld [vmem:[#allocation13 + $0x38] sm:$0xff]
    %v930 = vsel %vm815, %v882, 0
    %932 = vmatpush.msra.mxu0 0.0
    %933 = vmatpush.msra.mxu0 0.0
    %934 = vmatpush.msra.mxu0 0.0
    %935 = vmatpush.msra.mxu0 0.0
    %936 = vmatpush.msra.mxu0 0.0
    %937 = vmatpush.msra.mxu0 0.0
    %938 = vmatpush.msra.mxu0 0.0
    %939 = vmatpush.msra.mxu0 0.0
    %940 = vmatpush.msra.mxu0 %v928
    %941 = vmatpush.msra.mxu0 %v927
    %942 = vmatpush.msra.mxu0 %v926
    %943 = vmatpush.msra.mxu0 %v925
    %944 = vmatpush.msra.mxu0 %v924
    %945 = vmatpush.msra.mxu0 %v923
    %946 = vmatpush.msra.mxu0 %v922
    %947 = vmatpush.msra.mxu0 %v921
    %948 = vmatmul.f32.gmra.mxu0 %v930
    %v949 = vpop.f32.mrf.mxu0
    %v950 = vadd.f32 0.0, %v949
    %951 = vdwg.mxu0
    %v952 = vadd.f32 %v919, %v950
    %s953 = scalar_lea.vmem [#allocation13], 64
    %v954 = vld [vmem:[%s953] sm:$0xff]
    %v955 = vld [vmem:[%s953 + $0x8] sm:$0xff]
    %v956 = vld [vmem:[%s953 + $0x10] sm:$0xff]
    %v957 = vld [vmem:[%s953 + $0x18] sm:$0xff]
    %v958 = vld [vmem:[%s953 + $0x20] sm:$0xff]
    %v959 = vld [vmem:[%s953 + $0x28] sm:$0xff]
    %v960 = vld [vmem:[%s953 + $0x30] sm:$0xff]
    %v961 = vld [vmem:[%s953 + $0x38] sm:$0xff]
    %v962 = vrot.slane %v882, 2
    %v963 = vsel %vm815, %v962, 0
    %965 = vmatpush.msra.mxu0 0.0
    %966 = vmatpush.msra.mxu0 0.0
    %967 = vmatpush.msra.mxu0 0.0
    %968 = vmatpush.msra.mxu0 0.0
    %969 = vmatpush.msra.mxu0 0.0
    %970 = vmatpush.msra.mxu0 0.0
    %971 = vmatpush.msra.mxu0 0.0
    %972 = vmatpush.msra.mxu0 0.0
    %973 = vmatpush.msra.mxu0 %v961
    %974 = vmatpush.msra.mxu0 %v960
    %975 = vmatpush.msra.mxu0 %v959
    %976 = vmatpush.msra.mxu0 %v958
    %977 = vmatpush.msra.mxu0 %v957
    %978 = vmatpush.msra.mxu0 %v956
    %979 = vmatpush.msra.mxu0 %v955
    %980 = vmatpush.msra.mxu0 %v954
    %981 = vmatmul.f32.gmra.mxu0 %v963
    %v982 = vpop.f32.mrf.mxu0
    %v983 = vadd.f32 0.0, %v982
    %984 = vdwg.mxu0
    %v985 = vadd.f32 %v952, %v983
    %s986 = scalar_lea.vmem [#allocation13], 128
    %v987 = vld [vmem:[%s986] sm:$0xff]
    %v988 = vld [vmem:[%s986 + $0x8] sm:$0xff]
    %v989 = vld [vmem:[%s986 + $0x10] sm:$0xff]
    %v990 = vld [vmem:[%s986 + $0x18] sm:$0xff]
    %v991 = vld [vmem:[%s986 + $0x20] sm:$0xff]
    %v992 = vld [vmem:[%s986 + $0x28] sm:$0xff]
    %v993 = vld [vmem:[%s986 + $0x30] sm:$0xff]
    %v994 = vld [vmem:[%s986 + $0x38] sm:$0xff]
    %v995 = vrot.slane %v882, 4
    %v996 = vsel %vm815, %v995, 0
    %998 = vmatpush.msra.mxu0 0.0
    %999 = vmatpush.msra.mxu0 0.0
    %1000 = vmatpush.msra.mxu0 0.0
    %1001 = vmatpush.msra.mxu0 0.0
    %1002 = vmatpush.msra.mxu0 0.0
    %1003 = vmatpush.msra.mxu0 0.0
    %1004 = vmatpush.msra.mxu0 0.0
    %1005 = vmatpush.msra.mxu0 0.0
    %1006 = vmatpush.msra.mxu0 %v994
    %1007 = vmatpush.msra.mxu0 %v993
    %1008 = vmatpush.msra.mxu0 %v992
    %1009 = vmatpush.msra.mxu0 %v991
    %1010 = vmatpush.msra.mxu0 %v990
    %1011 = vmatpush.msra.mxu0 %v989
    %1012 = vmatpush.msra.mxu0 %v988
    %1013 = vmatpush.msra.mxu0 %v987
    %1014 = vmatmul.f32.gmra.mxu0 %v996
    %v1015 = vpop.f32.mrf.mxu0
    %v1016 = vadd.f32 0.0, %v1015
    %1017 = vdwg.mxu0
    %v1018 = vadd.f32 %v985, %v1016
    %s1019 = scalar_lea.vmem [#allocation13], 192
    %v1020 = vld [vmem:[%s1019] sm:$0xff]
    %v1021 = vld [vmem:[%s1019 + $0x8] sm:$0xff]
    %v1022 = vld [vmem:[%s1019 + $0x10] sm:$0xff]
    %v1023 = vld [vmem:[%s1019 + $0x18] sm:$0xff]
    %v1024 = vld [vmem:[%s1019 + $0x20] sm:$0xff]
    %v1025 = vld [vmem:[%s1019 + $0x28] sm:$0xff]
    %v1026 = vld [vmem:[%s1019 + $0x30] sm:$0xff]
    %v1027 = vld [vmem:[%s1019 + $0x38] sm:$0xff]
    %v1028 = vrot.slane %v882, 6
    %v1029 = vsel %vm815, %v1028, 0
    %1031 = vmatpush.msra.mxu0 0.0
    %1032 = vmatpush.msra.mxu0 0.0
    %1033 = vmatpush.msra.mxu0 0.0
    %1034 = vmatpush.msra.mxu0 0.0
    %1035 = vmatpush.msra.mxu0 0.0
    %1036 = vmatpush.msra.mxu0 0.0
    %1037 = vmatpush.msra.mxu0 0.0
    %1038 = vmatpush.msra.mxu0 0.0
    %1039 = vmatpush.msra.mxu0 %v1027
    %1040 = vmatpush.msra.mxu0 %v1026
    %1041 = vmatpush.msra.mxu0 %v1025
    %1042 = vmatpush.msra.mxu0 %v1024
    %1043 = vmatpush.msra.mxu0 %v1023
    %1044 = vmatpush.msra.mxu0 %v1022
    %1045 = vmatpush.msra.mxu0 %v1021
    %1046 = vmatpush.msra.mxu0 %v1020
    %1047 = vmatmul.f32.gmra.mxu0 %v1029
    %v1048 = vpop.f32.mrf.mxu0
    %v1049 = vadd.f32 0.0, %v1048
    %1050 = vdwg.mxu0
    %v1051 = vadd.f32 %v1018, %v1049
    %s1052 = scalar_lea.vmem [#allocation13], 256
    %v1053 = vld [vmem:[%s1052] sm:$0xff]
    %v1054 = vld [vmem:[%s1052 + $0x8] sm:$0xff]
    %v1055 = vld [vmem:[%s1052 + $0x10] sm:$0xff]
    %v1056 = vld [vmem:[%s1052 + $0x18] sm:$0xff]
    %v1057 = vld [vmem:[%s1052 + $0x20] sm:$0xff]
    %v1058 = vld [vmem:[%s1052 + $0x28] sm:$0xff]
    %v1059 = vld [vmem:[%s1052 + $0x30] sm:$0xff]
    %v1060 = vld [vmem:[%s1052 + $0x38] sm:$0xff]
    %v1062 = vsel %vm815, %v883, 0
    %1064 = vmatpush.msra.mxu0 0.0
    %1065 = vmatpush.msra.mxu0 0.0
    %1066 = vmatpush.msra.mxu0 0.0
    %1067 = vmatpush.msra.mxu0 0.0
    %1068 = vmatpush.msra.mxu0 0.0
    %1069 = vmatpush.msra.mxu0 0.0
    %1070 = vmatpush.msra.mxu0 0.0
    %1071 = vmatpush.msra.mxu0 0.0
    %1072 = vmatpush.msra.mxu0 %v1060
    %1073 = vmatpush.msra.mxu0 %v1059
    %1074 = vmatpush.msra.mxu0 %v1058
    %1075 = vmatpush.msra.mxu0 %v1057
    %1076 = vmatpush.msra.mxu0 %v1056
    %1077 = vmatpush.msra.mxu0 %v1055
    %1078 = vmatpush.msra.mxu0 %v1054
    %1079 = vmatpush.msra.mxu0 %v1053
    %1080 = vmatmul.f32.gmra.mxu0 %v1062
    %v1081 = vpop.f32.mrf.mxu0
    %v1082 = vadd.f32 0.0, %v1081
    %1083 = vdwg.mxu0
    %v1084 = vadd.f32 %v1051, %v1082
    %s1085 = scalar_lea.vmem [#allocation13], 320
    %v1086 = vld [vmem:[%s1085] sm:$0xff]
    %v1087 = vld [vmem:[%s1085 + $0x8] sm:$0xff]
    %v1088 = vld [vmem:[%s1085 + $0x10] sm:$0xff]
    %v1089 = vld [vmem:[%s1085 + $0x18] sm:$0xff]
    %v1090 = vld [vmem:[%s1085 + $0x20] sm:$0xff]
    %v1091 = vld [vmem:[%s1085 + $0x28] sm:$0xff]
    %v1092 = vld [vmem:[%s1085 + $0x30] sm:$0xff]
    %v1093 = vld [vmem:[%s1085 + $0x38] sm:$0xff]
    %v1094 = vrot.slane %v883, 2
    %v1095 = vsel %vm815, %v1094, 0
    %1097 = vmatpush.msra.mxu0 0.0
    %1098 = vmatpush.msra.mxu0 0.0
    %1099 = vmatpush.msra.mxu0 0.0
    %1100 = vmatpush.msra.mxu0 0.0
    %1101 = vmatpush.msra.mxu0 0.0
    %1102 = vmatpush.msra.mxu0 0.0
    %1103 = vmatpush.msra.mxu0 0.0
    %1104 = vmatpush.msra.mxu0 0.0
    %1105 = vmatpush.msra.mxu0 %v1093
    %1106 = vmatpush.msra.mxu0 %v1092
    %1107 = vmatpush.msra.mxu0 %v1091
    %1108 = vmatpush.msra.mxu0 %v1090
    %1109 = vmatpush.msra.mxu0 %v1089
    %1110 = vmatpush.msra.mxu0 %v1088
    %1111 = vmatpush.msra.mxu0 %v1087
    %1112 = vmatpush.msra.mxu0 %v1086
    %1113 = vmatmul.f32.gmra.mxu0 %v1095
    %v1114 = vpop.f32.mrf.mxu0
    %v1115 = vadd.f32 0.0, %v1114
    %1116 = vdwg.mxu0
    %v1117 = vadd.f32 %v1084, %v1115
    %s1118 = scalar_lea.vmem [#allocation13], 384
    %v1119 = vld [vmem:[%s1118] sm:$0xff]
    %v1120 = vld [vmem:[%s1118 + $0x8] sm:$0xff]
    %v1121 = vld [vmem:[%s1118 + $0x10] sm:$0xff]
    %v1122 = vld [vmem:[%s1118 + $0x18] sm:$0xff]
    %v1123 = vld [vmem:[%s1118 + $0x20] sm:$0xff]
    %v1124 = vld [vmem:[%s1118 + $0x28] sm:$0xff]
    %v1125 = vld [vmem:[%s1118 + $0x30] sm:$0xff]
    %v1126 = vld [vmem:[%s1118 + $0x38] sm:$0xff]
    %v1127 = vrot.slane %v883, 4
    %v1128 = vsel %vm815, %v1127, 0
    %1130 = vmatpush.msra.mxu0 0.0
    %1131 = vmatpush.msra.mxu0 0.0
    %1132 = vmatpush.msra.mxu0 0.0
    %1133 = vmatpush.msra.mxu0 0.0
    %1134 = vmatpush.msra.mxu0 0.0
    %1135 = vmatpush.msra.mxu0 0.0
    %1136 = vmatpush.msra.mxu0 0.0
    %1137 = vmatpush.msra.mxu0 0.0
    %1138 = vmatpush.msra.mxu0 %v1126
    %1139 = vmatpush.msra.mxu0 %v1125
    %1140 = vmatpush.msra.mxu0 %v1124
    %1141 = vmatpush.msra.mxu0 %v1123
    %1142 = vmatpush.msra.mxu0 %v1122
    %1143 = vmatpush.msra.mxu0 %v1121
    %1144 = vmatpush.msra.mxu0 %v1120
    %1145 = vmatpush.msra.mxu0 %v1119
    %1146 = vmatmul.f32.gmra.mxu0 %v1128
    %v1147 = vpop.f32.mrf.mxu0
    %v1148 = vadd.f32 0.0, %v1147
    %1149 = vdwg.mxu0
    %v1150 = vadd.f32 %v1117, %v1148
    %s1151 = scalar_lea.vmem [#allocation13], 448
    %v1152 = vld [vmem:[%s1151] sm:$0xff]
    %v1153 = vld [vmem:[%s1151 + $0x8] sm:$0xff]
    %v1154 = vld [vmem:[%s1151 + $0x10] sm:$0xff]
    %v1155 = vld [vmem:[%s1151 + $0x18] sm:$0xff]
    %v1156 = vld [vmem:[%s1151 + $0x20] sm:$0xff]
    %v1157 = vld [vmem:[%s1151 + $0x28] sm:$0xff]
    %v1158 = vld [vmem:[%s1151 + $0x30] sm:$0xff]
    %v1159 = vld [vmem:[%s1151 + $0x38] sm:$0xff]
    %v1160 = vrot.slane %v883, 6
    %v1161 = vsel %vm815, %v1160, 0
    %1163 = vmatpush.msra.mxu0 0.0
    %1164 = vmatpush.msra.mxu0 0.0
    %1165 = vmatpush.msra.mxu0 0.0
    %1166 = vmatpush.msra.mxu0 0.0
    %1167 = vmatpush.msra.mxu0 0.0
    %1168 = vmatpush.msra.mxu0 0.0
    %1169 = vmatpush.msra.mxu0 0.0
    %1170 = vmatpush.msra.mxu0 0.0
    %1171 = vmatpush.msra.mxu0 %v1159
    %1172 = vmatpush.msra.mxu0 %v1158
    %1173 = vmatpush.msra.mxu0 %v1157
    %1174 = vmatpush.msra.mxu0 %v1156
    %1175 = vmatpush.msra.mxu0 %v1155
    %1176 = vmatpush.msra.mxu0 %v1154
    %1177 = vmatpush.msra.mxu0 %v1153
    %1178 = vmatpush.msra.mxu0 %v1152
    %1179 = vmatmul.f32.gmra.mxu0 %v1161
    %v1180 = vpop.f32.mrf.mxu0
    %v1181 = vadd.f32 0.0, %v1180
    %1182 = vdwg.mxu0
    %v1183 = vadd.f32 %v1150, %v1181
    %s1184 = scalar_lea.vmem [#allocation13], 512
    %v1185 = vld [vmem:[%s1184] sm:$0xff]
    %v1186 = vld [vmem:[%s1184 + $0x8] sm:$0xff]
    %v1187 = vld [vmem:[%s1184 + $0x10] sm:$0xff]
    %v1188 = vld [vmem:[%s1184 + $0x18] sm:$0xff]
    %v1189 = vld [vmem:[%s1184 + $0x20] sm:$0xff]
    %v1190 = vld [vmem:[%s1184 + $0x28] sm:$0xff]
    %v1191 = vld [vmem:[%s1184 + $0x30] sm:$0xff]
    %v1192 = vld [vmem:[%s1184 + $0x38] sm:$0xff]
    %v1194 = vsel %vm815, %v884, 0
    %1196 = vmatpush.msra.mxu0 0.0
    %1197 = vmatpush.msra.mxu0 0.0
    %1198 = vmatpush.msra.mxu0 0.0
    %1199 = vmatpush.msra.mxu0 0.0
    %1200 = vmatpush.msra.mxu0 0.0
    %1201 = vmatpush.msra.mxu0 0.0
    %1202 = vmatpush.msra.mxu0 0.0
    %1203 = vmatpush.msra.mxu0 0.0
    %1204 = vmatpush.msra.mxu0 %v1192
    %1205 = vmatpush.msra.mxu0 %v1191
    %1206 = vmatpush.msra.mxu0 %v1190
    %1207 = vmatpush.msra.mxu0 %v1189
    %1208 = vmatpush.msra.mxu0 %v1188
    %1209 = vmatpush.msra.mxu0 %v1187
    %1210 = vmatpush.msra.mxu0 %v1186
    %1211 = vmatpush.msra.mxu0 %v1185
    %1212 = vmatmul.f32.gmra.mxu0 %v1194
    %v1213 = vpop.f32.mrf.mxu0
    %v1214 = vadd.f32 0.0, %v1213
    %1215 = vdwg.mxu0
    %v1216 = vadd.f32 %v1183, %v1214
    %s1217 = scalar_lea.vmem [#allocation13], 576
    %v1218 = vld [vmem:[%s1217] sm:$0xff]
    %v1219 = vld [vmem:[%s1217 + $0x8] sm:$0xff]
    %v1220 = vld [vmem:[%s1217 + $0x10] sm:$0xff]
    %v1221 = vld [vmem:[%s1217 + $0x18] sm:$0xff]
    %v1222 = vld [vmem:[%s1217 + $0x20] sm:$0xff]
    %v1223 = vld [vmem:[%s1217 + $0x28] sm:$0xff]
    %v1224 = vld [vmem:[%s1217 + $0x30] sm:$0xff]
    %v1225 = vld [vmem:[%s1217 + $0x38] sm:$0xff]
    %v1226 = vrot.slane %v884, 2
    %v1227 = vsel %vm815, %v1226, 0
    %1229 = vmatpush.msra.mxu0 0.0
    %1230 = vmatpush.msra.mxu0 0.0
    %1231 = vmatpush.msra.mxu0 0.0
    %1232 = vmatpush.msra.mxu0 0.0
    %1233 = vmatpush.msra.mxu0 0.0
    %1234 = vmatpush.msra.mxu0 0.0
    %1235 = vmatpush.msra.mxu0 0.0
    %1236 = vmatpush.msra.mxu0 0.0
    %1237 = vmatpush.msra.mxu0 %v1225
    %1238 = vmatpush.msra.mxu0 %v1224
    %1239 = vmatpush.msra.mxu0 %v1223
    %1240 = vmatpush.msra.mxu0 %v1222
    %1241 = vmatpush.msra.mxu0 %v1221
    %1242 = vmatpush.msra.mxu0 %v1220
    %1243 = vmatpush.msra.mxu0 %v1219
    %1244 = vmatpush.msra.mxu0 %v1218
    %1245 = vmatmul.f32.gmra.mxu0 %v1227
    %v1246 = vpop.f32.mrf.mxu0
    %v1247 = vadd.f32 0.0, %v1246
    %1248 = vdwg.mxu0
    %v1249 = vadd.f32 %v1216, %v1247
    %s1250 = scalar_lea.vmem [#allocation13], 640
    %v1251 = vld [vmem:[%s1250] sm:$0xff]
    %v1252 = vld [vmem:[%s1250 + $0x8] sm:$0xff]
    %v1253 = vld [vmem:[%s1250 + $0x10] sm:$0xff]
    %v1254 = vld [vmem:[%s1250 + $0x18] sm:$0xff]
    %v1255 = vld [vmem:[%s1250 + $0x20] sm:$0xff]
    %v1256 = vld [vmem:[%s1250 + $0x28] sm:$0xff]
    %v1257 = vld [vmem:[%s1250 + $0x30] sm:$0xff]
    %v1258 = vld [vmem:[%s1250 + $0x38] sm:$0xff]
    %v1259 = vrot.slane %v884, 4
    %v1260 = vsel %vm815, %v1259, 0
    %1262 = vmatpush.msra.mxu0 0.0
    %1263 = vmatpush.msra.mxu0 0.0
    %1264 = vmatpush.msra.mxu0 0.0
    %1265 = vmatpush.msra.mxu0 0.0
    %1266 = vmatpush.msra.mxu0 0.0
    %1267 = vmatpush.msra.mxu0 0.0
    %1268 = vmatpush.msra.mxu0 0.0
    %1269 = vmatpush.msra.mxu0 0.0
    %1270 = vmatpush.msra.mxu0 %v1258
    %1271 = vmatpush.msra.mxu0 %v1257
    %1272 = vmatpush.msra.mxu0 %v1256
    %1273 = vmatpush.msra.mxu0 %v1255
    %1274 = vmatpush.msra.mxu0 %v1254
    %1275 = vmatpush.msra.mxu0 %v1253
    %1276 = vmatpush.msra.mxu0 %v1252
    %1277 = vmatpush.msra.mxu0 %v1251
    %1278 = vmatmul.f32.gmra.mxu0 %v1260
    %v1279 = vpop.f32.mrf.mxu0
    %v1280 = vadd.f32 0.0, %v1279
    %1281 = vdwg.mxu0
    %v1282 = vadd.f32 %v1249, %v1280
    %s1283 = scalar_lea.vmem [#allocation13], 704
    %v1284 = vld [vmem:[%s1283] sm:$0xff]
    %v1285 = vld [vmem:[%s1283 + $0x8] sm:$0xff]
    %v1286 = vld [vmem:[%s1283 + $0x10] sm:$0xff]
    %v1287 = vld [vmem:[%s1283 + $0x18] sm:$0xff]
    %v1288 = vld [vmem:[%s1283 + $0x20] sm:$0xff]
    %v1289 = vld [vmem:[%s1283 + $0x28] sm:$0xff]
    %v1290 = vld [vmem:[%s1283 + $0x30] sm:$0xff]
    %v1291 = vld [vmem:[%s1283 + $0x38] sm:$0xff]
    %v1292 = vrot.slane %v884, 6
    %v1293 = vsel %vm815, %v1292, 0
    %1295 = vmatpush.msra.mxu0 0.0
    %1296 = vmatpush.msra.mxu0 0.0
    %1297 = vmatpush.msra.mxu0 0.0
    %1298 = vmatpush.msra.mxu0 0.0
    %1299 = vmatpush.msra.mxu0 0.0
    %1300 = vmatpush.msra.mxu0 0.0
    %1301 = vmatpush.msra.mxu0 0.0
    %1302 = vmatpush.msra.mxu0 0.0
    %1303 = vmatpush.msra.mxu0 %v1291
    %1304 = vmatpush.msra.mxu0 %v1290
    %1305 = vmatpush.msra.mxu0 %v1289
    %1306 = vmatpush.msra.mxu0 %v1288
    %1307 = vmatpush.msra.mxu0 %v1287
    %1308 = vmatpush.msra.mxu0 %v1286
    %1309 = vmatpush.msra.mxu0 %v1285
    %1310 = vmatpush.msra.mxu0 %v1284
    %1311 = vmatmul.f32.gmra.mxu0 %v1293
    %v1312 = vpop.f32.mrf.mxu0
    %v1313 = vadd.f32 0.0, %v1312
    %1314 = vdwg.mxu0
    %v1315 = vadd.f32 %v1282, %v1313
    %s1316 = scalar_lea.vmem [#allocation13], 768
    %v1317 = vld [vmem:[%s1316] sm:$0xff]
    %v1318 = vld [vmem:[%s1316 + $0x8] sm:$0xff]
    %v1319 = vld [vmem:[%s1316 + $0x10] sm:$0xff]
    %v1320 = vld [vmem:[%s1316 + $0x18] sm:$0xff]
    %v1321 = vld [vmem:[%s1316 + $0x20] sm:$0xff]
    %v1322 = vld [vmem:[%s1316 + $0x28] sm:$0xff]
    %v1323 = vld [vmem:[%s1316 + $0x30] sm:$0xff]
    %v1324 = vld [vmem:[%s1316 + $0x38] sm:$0xff]
    %v1326 = vsel %vm815, %v885, 0
    %1328 = vmatpush.msra.mxu0 0.0
    %1329 = vmatpush.msra.mxu0 0.0
    %1330 = vmatpush.msra.mxu0 0.0
    %1331 = vmatpush.msra.mxu0 0.0
    %1332 = vmatpush.msra.mxu0 0.0
    %1333 = vmatpush.msra.mxu0 0.0
    %1334 = vmatpush.msra.mxu0 0.0
    %1335 = vmatpush.msra.mxu0 0.0
    %1336 = vmatpush.msra.mxu0 %v1324
    %1337 = vmatpush.msra.mxu0 %v1323
    %1338 = vmatpush.msra.mxu0 %v1322
    %1339 = vmatpush.msra.mxu0 %v1321
    %1340 = vmatpush.msra.mxu0 %v1320
    %1341 = vmatpush.msra.mxu0 %v1319
    %1342 = vmatpush.msra.mxu0 %v1318
    %1343 = vmatpush.msra.mxu0 %v1317
    %1344 = vmatmul.f32.gmra.mxu0 %v1326
    %v1345 = vpop.f32.mrf.mxu0
    %v1346 = vadd.f32 0.0, %v1345
    %1347 = vdwg.mxu0
    %v1348 = vadd.f32 %v1315, %v1346
    %s1349 = scalar_lea.vmem [#allocation13], 832
    %v1350 = vld [vmem:[%s1349] sm:$0xff]
    %v1351 = vld [vmem:[%s1349 + $0x8] sm:$0xff]
    %v1352 = vld [vmem:[%s1349 + $0x10] sm:$0xff]
    %v1353 = vld [vmem:[%s1349 + $0x18] sm:$0xff]
    %v1354 = vld [vmem:[%s1349 + $0x20] sm:$0xff]
    %v1355 = vld [vmem:[%s1349 + $0x28] sm:$0xff]
    %v1356 = vld [vmem:[%s1349 + $0x30] sm:$0xff]
    %v1357 = vld [vmem:[%s1349 + $0x38] sm:$0xff]
    %v1358 = vrot.slane %v885, 2
    %v1359 = vsel %vm815, %v1358, 0
    %1361 = vmatpush.msra.mxu0 0.0
    %1362 = vmatpush.msra.mxu0 0.0
    %1363 = vmatpush.msra.mxu0 0.0
    %1364 = vmatpush.msra.mxu0 0.0
    %1365 = vmatpush.msra.mxu0 0.0
    %1366 = vmatpush.msra.mxu0 0.0
    %1367 = vmatpush.msra.mxu0 0.0
    %1368 = vmatpush.msra.mxu0 0.0
    %1369 = vmatpush.msra.mxu0 %v1357
    %1370 = vmatpush.msra.mxu0 %v1356
    %1371 = vmatpush.msra.mxu0 %v1355
    %1372 = vmatpush.msra.mxu0 %v1354
    %1373 = vmatpush.msra.mxu0 %v1353
    %1374 = vmatpush.msra.mxu0 %v1352
    %1375 = vmatpush.msra.mxu0 %v1351
    %1376 = vmatpush.msra.mxu0 %v1350
    %1377 = vmatmul.f32.gmra.mxu0 %v1359
    %v1378 = vpop.f32.mrf.mxu0
    %v1379 = vadd.f32 0.0, %v1378
    %1380 = vdwg.mxu0
    %v1381 = vadd.f32 %v1348, %v1379
    %s1382 = scalar_lea.vmem [#allocation13], 896
    %v1383 = vld [vmem:[%s1382] sm:$0xff]
    %v1384 = vld [vmem:[%s1382 + $0x8] sm:$0xff]
    %v1385 = vld [vmem:[%s1382 + $0x10] sm:$0xff]
    %v1386 = vld [vmem:[%s1382 + $0x18] sm:$0xff]
    %v1387 = vld [vmem:[%s1382 + $0x20] sm:$0xff]
    %v1388 = vld [vmem:[%s1382 + $0x28] sm:$0xff]
    %v1389 = vld [vmem:[%s1382 + $0x30] sm:$0xff]
    %v1390 = vld [vmem:[%s1382 + $0x38] sm:$0xff]
    %v1391 = vrot.slane %v885, 4
    %v1392 = vsel %vm815, %v1391, 0
    %1394 = vmatpush.msra.mxu0 0.0
    %1395 = vmatpush.msra.mxu0 0.0
    %1396 = vmatpush.msra.mxu0 0.0
    %1397 = vmatpush.msra.mxu0 0.0
    %1398 = vmatpush.msra.mxu0 0.0
    %1399 = vmatpush.msra.mxu0 0.0
    %1400 = vmatpush.msra.mxu0 0.0
    %1401 = vmatpush.msra.mxu0 0.0
    %1402 = vmatpush.msra.mxu0 %v1390
    %1403 = vmatpush.msra.mxu0 %v1389
    %1404 = vmatpush.msra.mxu0 %v1388
    %1405 = vmatpush.msra.mxu0 %v1387
    %1406 = vmatpush.msra.mxu0 %v1386
    %1407 = vmatpush.msra.mxu0 %v1385
    %1408 = vmatpush.msra.mxu0 %v1384
    %1409 = vmatpush.msra.mxu0 %v1383
    %1410 = vmatmul.f32.gmra.mxu0 %v1392
    %v1411 = vpop.f32.mrf.mxu0
    %v1412 = vadd.f32 0.0, %v1411
    %1413 = vdwg.mxu0
    %v1414 = vadd.f32 %v1381, %v1412
    %s1415 = scalar_lea.vmem [#allocation13], 960
    %v1416 = vld [vmem:[%s1415] sm:$0xff]
    %v1417 = vld [vmem:[%s1415 + $0x8] sm:$0xff]
    %v1418 = vld [vmem:[%s1415 + $0x10] sm:$0xff]
    %v1419 = vld [vmem:[%s1415 + $0x18] sm:$0xff]
    %v1420 = vld [vmem:[%s1415 + $0x20] sm:$0xff]
    %v1421 = vld [vmem:[%s1415 + $0x28] sm:$0xff]
    %v1422 = vld [vmem:[%s1415 + $0x30] sm:$0xff]
    %v1423 = vld [vmem:[%s1415 + $0x38] sm:$0xff]
    %v1424 = vrot.slane %v885, 6
    %v1425 = vsel %vm815, %v1424, 0
    %1427 = vmatpush.msra.mxu0 0.0
    %1428 = vmatpush.msra.mxu0 0.0
    %1429 = vmatpush.msra.mxu0 0.0
    %1430 = vmatpush.msra.mxu0 0.0
    %1431 = vmatpush.msra.mxu0 0.0
    %1432 = vmatpush.msra.mxu0 0.0
    %1433 = vmatpush.msra.mxu0 0.0
    %1434 = vmatpush.msra.mxu0 0.0
    %1435 = vmatpush.msra.mxu0 %v1423
    %1436 = vmatpush.msra.mxu0 %v1422
    %1437 = vmatpush.msra.mxu0 %v1421
    %1438 = vmatpush.msra.mxu0 %v1420
    %1439 = vmatpush.msra.mxu0 %v1419
    %1440 = vmatpush.msra.mxu0 %v1418
    %1441 = vmatpush.msra.mxu0 %v1417
    %1442 = vmatpush.msra.mxu0 %v1416
    %1443 = vmatmul.f32.gmra.mxu0 %v1425
    %v1444 = vpop.f32.mrf.mxu0
    %v1445 = vadd.f32 0.0, %v1444
    %1446 = vdwg.mxu0
    %v1447 = vadd.f32 %v1414, %v1445
    %s1448 = scalar_lea.vmem [#allocation13], 1024
    %v1449 = vld [vmem:[%s1448] sm:$0xff]
    %v1450 = vld [vmem:[%s1448 + $0x8] sm:$0xff]
    %v1451 = vld [vmem:[%s1448 + $0x10] sm:$0xff]
    %v1452 = vld [vmem:[%s1448 + $0x18] sm:$0xff]
    %v1453 = vld [vmem:[%s1448 + $0x20] sm:$0xff]
    %v1454 = vld [vmem:[%s1448 + $0x28] sm:$0xff]
    %v1455 = vld [vmem:[%s1448 + $0x30] sm:$0xff]
    %v1456 = vld [vmem:[%s1448 + $0x38] sm:$0xff]
    %v1458 = vsel %vm815, %v886, 0
    %1460 = vmatpush.msra.mxu0 0.0
    %1461 = vmatpush.msra.mxu0 0.0
    %1462 = vmatpush.msra.mxu0 0.0
    %1463 = vmatpush.msra.mxu0 0.0
    %1464 = vmatpush.msra.mxu0 0.0
    %1465 = vmatpush.msra.mxu0 0.0
    %1466 = vmatpush.msra.mxu0 0.0
    %1467 = vmatpush.msra.mxu0 0.0
    %1468 = vmatpush.msra.mxu0 %v1456
    %1469 = vmatpush.msra.mxu0 %v1455
    %1470 = vmatpush.msra.mxu0 %v1454
    %1471 = vmatpush.msra.mxu0 %v1453
    %1472 = vmatpush.msra.mxu0 %v1452
    %1473 = vmatpush.msra.mxu0 %v1451
    %1474 = vmatpush.msra.mxu0 %v1450
    %1475 = vmatpush.msra.mxu0 %v1449
    %1476 = vmatmul.f32.gmra.mxu0 %v1458
    %v1477 = vpop.f32.mrf.mxu0
    %v1478 = vadd.f32 0.0, %v1477
    %1479 = vdwg.mxu0
    %v1480 = vadd.f32 %v1447, %v1478
    %s1481 = scalar_lea.vmem [#allocation13], 1088
    %v1482 = vld [vmem:[%s1481] sm:$0xff]
    %v1483 = vld [vmem:[%s1481 + $0x8] sm:$0xff]
    %v1484 = vld [vmem:[%s1481 + $0x10] sm:$0xff]
    %v1485 = vld [vmem:[%s1481 + $0x18] sm:$0xff]
    %v1486 = vld [vmem:[%s1481 + $0x20] sm:$0xff]
    %v1487 = vld [vmem:[%s1481 + $0x28] sm:$0xff]
    %v1488 = vld [vmem:[%s1481 + $0x30] sm:$0xff]
    %v1489 = vld [vmem:[%s1481 + $0x38] sm:$0xff]
    %v1490 = vrot.slane %v886, 2
    %v1491 = vsel %vm815, %v1490, 0
    %1493 = vmatpush.msra.mxu0 0.0
    %1494 = vmatpush.msra.mxu0 0.0
    %1495 = vmatpush.msra.mxu0 0.0
    %1496 = vmatpush.msra.mxu0 0.0
    %1497 = vmatpush.msra.mxu0 0.0
    %1498 = vmatpush.msra.mxu0 0.0
    %1499 = vmatpush.msra.mxu0 0.0
    %1500 = vmatpush.msra.mxu0 0.0
    %1501 = vmatpush.msra.mxu0 %v1489
    %1502 = vmatpush.msra.mxu0 %v1488
    %1503 = vmatpush.msra.mxu0 %v1487
    %1504 = vmatpush.msra.mxu0 %v1486
    %1505 = vmatpush.msra.mxu0 %v1485
    %1506 = vmatpush.msra.mxu0 %v1484
    %1507 = vmatpush.msra.mxu0 %v1483
    %1508 = vmatpush.msra.mxu0 %v1482
    %1509 = vmatmul.f32.gmra.mxu0 %v1491
    %v1510 = vpop.f32.mrf.mxu0
    %v1511 = vadd.f32 0.0, %v1510
    %1512 = vdwg.mxu0
    %v1513 = vadd.f32 %v1480, %v1511
    %s1514 = scalar_lea.vmem [#allocation13], 1152
    %v1515 = vld [vmem:[%s1514] sm:$0xff]
    %v1516 = vld [vmem:[%s1514 + $0x8] sm:$0xff]
    %v1517 = vld [vmem:[%s1514 + $0x10] sm:$0xff]
    %v1518 = vld [vmem:[%s1514 + $0x18] sm:$0xff]
    %v1519 = vld [vmem:[%s1514 + $0x20] sm:$0xff]
    %v1520 = vld [vmem:[%s1514 + $0x28] sm:$0xff]
    %v1521 = vld [vmem:[%s1514 + $0x30] sm:$0xff]
    %v1522 = vld [vmem:[%s1514 + $0x38] sm:$0xff]
    %v1523 = vrot.slane %v886, 4
    %v1524 = vsel %vm815, %v1523, 0
    %1526 = vmatpush.msra.mxu0 0.0
    %1527 = vmatpush.msra.mxu0 0.0
    %1528 = vmatpush.msra.mxu0 0.0
    %1529 = vmatpush.msra.mxu0 0.0
    %1530 = vmatpush.msra.mxu0 0.0
    %1531 = vmatpush.msra.mxu0 0.0
    %1532 = vmatpush.msra.mxu0 0.0
    %1533 = vmatpush.msra.mxu0 0.0
    %1534 = vmatpush.msra.mxu0 %v1522
    %1535 = vmatpush.msra.mxu0 %v1521
    %1536 = vmatpush.msra.mxu0 %v1520
    %1537 = vmatpush.msra.mxu0 %v1519
    %1538 = vmatpush.msra.mxu0 %v1518
    %1539 = vmatpush.msra.mxu0 %v1517
    %1540 = vmatpush.msra.mxu0 %v1516
    %1541 = vmatpush.msra.mxu0 %v1515
    %1542 = vmatmul.f32.gmra.mxu0 %v1524
    %v1543 = vpop.f32.mrf.mxu0
    %v1544 = vadd.f32 0.0, %v1543
    %1545 = vdwg.mxu0
    %v1546 = vadd.f32 %v1513, %v1544
    %s1547 = scalar_lea.vmem [#allocation13], 1216
    %v1548 = vld [vmem:[%s1547] sm:$0xff]
    %v1549 = vld [vmem:[%s1547 + $0x8] sm:$0xff]
    %v1550 = vld [vmem:[%s1547 + $0x10] sm:$0xff]
    %v1551 = vld [vmem:[%s1547 + $0x18] sm:$0xff]
    %v1552 = vld [vmem:[%s1547 + $0x20] sm:$0xff]
    %v1553 = vld [vmem:[%s1547 + $0x28] sm:$0xff]
    %v1554 = vld [vmem:[%s1547 + $0x30] sm:$0xff]
    %v1555 = vld [vmem:[%s1547 + $0x38] sm:$0xff]
    %v1556 = vrot.slane %v886, 6
    %v1557 = vsel %vm815, %v1556, 0
    %1559 = vmatpush.msra.mxu0 0.0
    %1560 = vmatpush.msra.mxu0 0.0
    %1561 = vmatpush.msra.mxu0 0.0
    %1562 = vmatpush.msra.mxu0 0.0
    %1563 = vmatpush.msra.mxu0 0.0
    %1564 = vmatpush.msra.mxu0 0.0
    %1565 = vmatpush.msra.mxu0 0.0
    %1566 = vmatpush.msra.mxu0 0.0
    %1567 = vmatpush.msra.mxu0 %v1555
    %1568 = vmatpush.msra.mxu0 %v1554
    %1569 = vmatpush.msra.mxu0 %v1553
    %1570 = vmatpush.msra.mxu0 %v1552
    %1571 = vmatpush.msra.mxu0 %v1551
    %1572 = vmatpush.msra.mxu0 %v1550
    %1573 = vmatpush.msra.mxu0 %v1549
    %1574 = vmatpush.msra.mxu0 %v1548
    %1575 = vmatmul.f32.gmra.mxu0 %v1557
    %v1576 = vpop.f32.mrf.mxu0
    %v1577 = vadd.f32 0.0, %v1576
    %1578 = vdwg.mxu0
    %v1579 = vadd.f32 %v1546, %v1577
    %s1580 = scalar_lea.vmem [#allocation13], 1280
    %v1581 = vld [vmem:[%s1580] sm:$0xff]
    %v1582 = vld [vmem:[%s1580 + $0x8] sm:$0xff]
    %v1583 = vld [vmem:[%s1580 + $0x10] sm:$0xff]
    %v1584 = vld [vmem:[%s1580 + $0x18] sm:$0xff]
    %v1585 = vld [vmem:[%s1580 + $0x20] sm:$0xff]
    %v1586 = vld [vmem:[%s1580 + $0x28] sm:$0xff]
    %v1587 = vld [vmem:[%s1580 + $0x30] sm:$0xff]
    %v1588 = vld [vmem:[%s1580 + $0x38] sm:$0xff]
    %v1590 = vsel %vm815, %v887, 0
    %1592 = vmatpush.msra.mxu0 0.0
    %1593 = vmatpush.msra.mxu0 0.0
    %1594 = vmatpush.msra.mxu0 0.0
    %1595 = vmatpush.msra.mxu0 0.0
    %1596 = vmatpush.msra.mxu0 0.0
    %1597 = vmatpush.msra.mxu0 0.0
    %1598 = vmatpush.msra.mxu0 0.0
    %1599 = vmatpush.msra.mxu0 0.0
    %1600 = vmatpush.msra.mxu0 %v1588
    %1601 = vmatpush.msra.mxu0 %v1587
    %1602 = vmatpush.msra.mxu0 %v1586
    %1603 = vmatpush.msra.mxu0 %v1585
    %1604 = vmatpush.msra.mxu0 %v1584
    %1605 = vmatpush.msra.mxu0 %v1583
    %1606 = vmatpush.msra.mxu0 %v1582
    %1607 = vmatpush.msra.mxu0 %v1581
    %1608 = vmatmul.f32.gmra.mxu0 %v1590
    %v1609 = vpop.f32.mrf.mxu0
    %v1610 = vadd.f32 0.0, %v1609
    %1611 = vdwg.mxu0
    %v1612 = vadd.f32 %v1579, %v1610
    %s1613 = scalar_lea.vmem [#allocation13], 1344
    %v1614 = vld [vmem:[%s1613] sm:$0xff]
    %v1615 = vld [vmem:[%s1613 + $0x8] sm:$0xff]
    %v1616 = vld [vmem:[%s1613 + $0x10] sm:$0xff]
    %v1617 = vld [vmem:[%s1613 + $0x18] sm:$0xff]
    %v1618 = vld [vmem:[%s1613 + $0x20] sm:$0xff]
    %v1619 = vld [vmem:[%s1613 + $0x28] sm:$0xff]
    %v1620 = vld [vmem:[%s1613 + $0x30] sm:$0xff]
    %v1621 = vld [vmem:[%s1613 + $0x38] sm:$0xff]
    %v1622 = vrot.slane %v887, 2
    %v1623 = vsel %vm815, %v1622, 0
    %1625 = vmatpush.msra.mxu0 0.0
    %1626 = vmatpush.msra.mxu0 0.0
    %1627 = vmatpush.msra.mxu0 0.0
    %1628 = vmatpush.msra.mxu0 0.0
    %1629 = vmatpush.msra.mxu0 0.0
    %1630 = vmatpush.msra.mxu0 0.0
    %1631 = vmatpush.msra.mxu0 0.0
    %1632 = vmatpush.msra.mxu0 0.0
    %1633 = vmatpush.msra.mxu0 %v1621
    %1634 = vmatpush.msra.mxu0 %v1620
    %1635 = vmatpush.msra.mxu0 %v1619
    %1636 = vmatpush.msra.mxu0 %v1618
    %1637 = vmatpush.msra.mxu0 %v1617
    %1638 = vmatpush.msra.mxu0 %v1616
    %1639 = vmatpush.msra.mxu0 %v1615
    %1640 = vmatpush.msra.mxu0 %v1614
    %1641 = vmatmul.f32.gmra.mxu0 %v1623
    %v1642 = vpop.f32.mrf.mxu0
    %v1643 = vadd.f32 0.0, %v1642
    %1644 = vdwg.mxu0
    %v1645 = vadd.f32 %v1612, %v1643
    %s1646 = scalar_lea.vmem [#allocation13], 1408
    %v1647 = vld [vmem:[%s1646] sm:$0xff]
    %v1648 = vld [vmem:[%s1646 + $0x8] sm:$0xff]
    %v1649 = vld [vmem:[%s1646 + $0x10] sm:$0xff]
    %v1650 = vld [vmem:[%s1646 + $0x18] sm:$0xff]
    %v1651 = vld [vmem:[%s1646 + $0x20] sm:$0xff]
    %v1652 = vld [vmem:[%s1646 + $0x28] sm:$0xff]
    %v1653 = vld [vmem:[%s1646 + $0x30] sm:$0xff]
    %v1654 = vld [vmem:[%s1646 + $0x38] sm:$0xff]
    %v1655 = vrot.slane %v887, 4
    %v1656 = vsel %vm815, %v1655, 0
    %1658 = vmatpush.msra.mxu0 0.0
    %1659 = vmatpush.msra.mxu0 0.0
    %1660 = vmatpush.msra.mxu0 0.0
    %1661 = vmatpush.msra.mxu0 0.0
    %1662 = vmatpush.msra.mxu0 0.0
    %1663 = vmatpush.msra.mxu0 0.0
    %1664 = vmatpush.msra.mxu0 0.0
    %1665 = vmatpush.msra.mxu0 0.0
    %1666 = vmatpush.msra.mxu0 %v1654
    %1667 = vmatpush.msra.mxu0 %v1653
    %1668 = vmatpush.msra.mxu0 %v1652
    %1669 = vmatpush.msra.mxu0 %v1651
    %1670 = vmatpush.msra.mxu0 %v1650
    %1671 = vmatpush.msra.mxu0 %v1649
    %1672 = vmatpush.msra.mxu0 %v1648
    %1673 = vmatpush.msra.mxu0 %v1647
    %1674 = vmatmul.f32.gmra.mxu0 %v1656
    %v1675 = vpop.f32.mrf.mxu0
    %v1676 = vadd.f32 0.0, %v1675
    %1677 = vdwg.mxu0
    %v1678 = vadd.f32 %v1645, %v1676
    %s1679 = scalar_lea.vmem [#allocation13], 1472
    %v1680 = vld [vmem:[%s1679] sm:$0xff]
    %v1681 = vld [vmem:[%s1679 + $0x8] sm:$0xff]
    %v1682 = vld [vmem:[%s1679 + $0x10] sm:$0xff]
    %v1683 = vld [vmem:[%s1679 + $0x18] sm:$0xff]
    %v1684 = vld [vmem:[%s1679 + $0x20] sm:$0xff]
    %v1685 = vld [vmem:[%s1679 + $0x28] sm:$0xff]
    %v1686 = vld [vmem:[%s1679 + $0x30] sm:$0xff]
    %v1687 = vld [vmem:[%s1679 + $0x38] sm:$0xff]
    %v1688 = vrot.slane %v887, 6
    %v1689 = vsel %vm815, %v1688, 0
    %1691 = vmatpush.msra.mxu0 0.0
    %1692 = vmatpush.msra.mxu0 0.0
    %1693 = vmatpush.msra.mxu0 0.0
    %1694 = vmatpush.msra.mxu0 0.0
    %1695 = vmatpush.msra.mxu0 0.0
    %1696 = vmatpush.msra.mxu0 0.0
    %1697 = vmatpush.msra.mxu0 0.0
    %1698 = vmatpush.msra.mxu0 0.0
    %1699 = vmatpush.msra.mxu0 %v1687
    %1700 = vmatpush.msra.mxu0 %v1686
    %1701 = vmatpush.msra.mxu0 %v1685
    %1702 = vmatpush.msra.mxu0 %v1684
    %1703 = vmatpush.msra.mxu0 %v1683
    %1704 = vmatpush.msra.mxu0 %v1682
    %1705 = vmatpush.msra.mxu0 %v1681
    %1706 = vmatpush.msra.mxu0 %v1680
    %1707 = vmatmul.f32.gmra.mxu0 %v1689
    %v1708 = vpop.f32.mrf.mxu0
    %v1709 = vadd.f32 0.0, %v1708
    %1710 = vdwg.mxu0
    %v1711 = vadd.f32 %v1678, %v1709
    %s1712 = scalar_lea.vmem [#allocation13], 1536
    %v1713 = vld [vmem:[%s1712] sm:$0xff]
    %v1714 = vld [vmem:[%s1712 + $0x8] sm:$0xff]
    %v1715 = vld [vmem:[%s1712 + $0x10] sm:$0xff]
    %v1716 = vld [vmem:[%s1712 + $0x18] sm:$0xff]
    %v1717 = vld [vmem:[%s1712 + $0x20] sm:$0xff]
    %v1718 = vld [vmem:[%s1712 + $0x28] sm:$0xff]
    %v1719 = vld [vmem:[%s1712 + $0x30] sm:$0xff]
    %v1720 = vld [vmem:[%s1712 + $0x38] sm:$0xff]
    %v1722 = vsel %vm815, %v888, 0
    %1724 = vmatpush.msra.mxu0 0.0
    %1725 = vmatpush.msra.mxu0 0.0
    %1726 = vmatpush.msra.mxu0 0.0
    %1727 = vmatpush.msra.mxu0 0.0
    %1728 = vmatpush.msra.mxu0 0.0
    %1729 = vmatpush.msra.mxu0 0.0
    %1730 = vmatpush.msra.mxu0 0.0
    %1731 = vmatpush.msra.mxu0 0.0
    %1732 = vmatpush.msra.mxu0 %v1720
    %1733 = vmatpush.msra.mxu0 %v1719
    %1734 = vmatpush.msra.mxu0 %v1718
    %1735 = vmatpush.msra.mxu0 %v1717
    %1736 = vmatpush.msra.mxu0 %v1716
    %1737 = vmatpush.msra.mxu0 %v1715
    %1738 = vmatpush.msra.mxu0 %v1714
    %1739 = vmatpush.msra.mxu0 %v1713
    %1740 = vmatmul.f32.gmra.mxu0 %v1722
    %v1741 = vpop.f32.mrf.mxu0
    %v1742 = vadd.f32 0.0, %v1741
    %1743 = vdwg.mxu0
    %v1744 = vadd.f32 %v1711, %v1742
    %v1745 = vxor.u32 %v1744, 2147483648
    %v1746 = vmul.f32 %v1745, 1.442695
    %v1747 = vpow.pop %v1746
    %v1748 = vadd.f32 %v1747, 1.0
    %v1749 = vrcp.pop %v1748
    %v1750 = vmul.f32 %v1748, %v1749
    %v1751 = vsub.f32 1.0, %v1750
    %v1752 = vmul.f32 %v1749, %v1751
    %v1753 = vadd.f32 %v1749, %v1752
    %vm1754 = vweird.f32 %v1748
    %vm1755 = vweird.f32 %v1749
    %vm1756 = vmor %vm1754, %vm1755
    %v1757 = vsel %vm1756, %v1749, %v1753
    %v1758 = vand.u32 2147483647, %v1748
    %vm1759 = vcmp.eq.f32.partialorder %v1758, 8.507059e+37
    %v1760 = vand.u32 %v1748, 2147483648
    %v1761 = vor.u32 1.1754944e-38, %v1760
    %v1762 = vsel %vm1759, %v1761, %v1757
    %v1763 = vmul.f32 1.0, %v1762
    %v1764 = vtanh.pop %v1744
    %v1765 = vld [vmem:[%s2] sm:$0x3]
    %1767 = vrot.lane.b32.xlu0 %v1765, 32
    %v1768 = vpop.permute.xlu0 %1767
    %v1770 = vmul.f32 %v1763, %v1768
    %1772 = vrot.lane.b32.xlu0 %v1764, 64
    %v1773 = vpop.permute.xlu0 %1772
    %v1775 = vmul.f32 %v1763, %v1773
    %1777 = vrot.lane.b32.xlu0 %v1775, 32
    %v1778 = vpop.permute.xlu0 %1777
    %v1780 = vadd.f32 %v1770, %v1778
    %v1781 = vtanh.pop %v1780
    %1783 = vrot.lane.b32.xlu0 %v1781, 64
    %v1784 = vpop.permute.xlu0 %1783
    %v1786 = vmul.f32 %v1763, %v1784
    %v1787 = vld [vmem:[%s14] sm:$0xff]
    %v1788 = vld [vmem:[%s14 + $0x8] sm:$0xff]
    %v1789 = vld [vmem:[%s14 + $0x10] sm:$0xff]
    %v1790 = vld [vmem:[%s14 + $0x18] sm:$0xff]
    %v1791 = vld [vmem:[%s15] sm:$0x1]
    %v1793 = vperm.slane %v1791, 0
    %1796 = vrot.lane.b32.xlu0 %v1786, 32
    %v1797 = vpop.permute.xlu0 %1796
    %v1798 = vsel %vm454, %v1797, 0
    %1800 = vmatpush.msra.mxu0 0.0
    %1801 = vmatpush.msra.mxu0 0.0
    %1802 = vmatpush.msra.mxu0 0.0
    %1803 = vmatpush.msra.mxu0 0.0
    %1804 = vmatpush.msra.mxu0 0.0
    %1805 = vmatpush.msra.mxu0 0.0
    %1806 = vmatpush.msra.mxu0 0.0
    %1807 = vmatpush.msra.mxu0 0.0
    %1808 = vmatpush.msra.mxu0 0.0
    %1809 = vmatpush.msra.mxu0 0.0
    %1810 = vmatpush.msra.mxu0 0.0
    %1811 = vmatpush.msra.mxu0 0.0
    %1812 = vmatpush.msra.mxu0 %v1790
    %1813 = vmatpush.msra.mxu0 %v1789
    %1814 = vmatpush.msra.mxu0 %v1788
    %1815 = vmatpush.msra.mxu0 %v1787
    %1816 = vmatmul.f32.gmra.mxu0 %v1798
    %v1817 = vpop.f32.mrf.mxu0
    %v1818 = vadd.f32 %v1793, %v1817
    %1819 = vdwg.mxu0
    %v1820 = vlaneseq
    %v1821 = vand.u32 %v1820, 127
    %vm1822 = vcmp.ge.s32.totalorder %v1821, 1
    %vm1823 = vcmp.lt.s32.totalorder %v1821, 5
    %vm1824 = vmand %vm1822, %vm1823
    %v1825 = vand.u32 2147483647, %v1818
    %v1826 = vadd.f32 %v1825, 1.0
    %v1827 = vrcp.pop %v1826
    %v1828 = vmul.f32 %v1826, %v1827
    %v1829 = vsub.f32 1.0, %v1828
    %v1830 = vmul.f32 %v1827, %v1829
    %v1831 = vadd.f32 %v1827, %v1830
    %vm1832 = vweird.f32 %v1826
    %vm1833 = vweird.f32 %v1827
    %vm1834 = vmor %vm1832, %vm1833
    %v1835 = vsel %vm1834, %v1827, %v1831
    %v1836 = vand.u32 2147483647, %v1826
    %vm1837 = vcmp.eq.f32.partialorder %v1836, 8.507059e+37
    %v1838 = vand.u32 %v1826, 2147483648
    %v1839 = vor.u32 1.1754944e-38, %v1838
    %v1840 = vsel %vm1837, %v1839, %v1835
    %v1841 = vmul.f32 %v1818, %v1840
    %v1842 = vsel %vm1824, %v1841, %v1818
    %1843 = vrot.lane.b32.xlu0 %v1786, 41
    %v1844 = vpop.permute.xlu0 %1843
    %1847 = vrot.lane.b32.xlu0 %v1780, 9
    %v1848 = vpop.permute.xlu0 %1847
    %vm1850 = vcmask 72704
    %v1851 = vsel %vm1850, %v1842, %v1844
    %vm1852 = vcmask 334848
    %v1853 = vsel %vm1852, %v1851, %v1848
    %vm1854 = vcmask 596992
    %v1855 = vsel %vm1854, %v1853, 0.0
    %1856 = vst [vmem:[%s16] sm:$0x3] %v1855
    // Predicated region
    $region106: #{a3c_conv_forward.1} parent=1 // pred_check
      _
    $region107: #{a3c_conv_forward.1} parent=1 // pred_check_branch
      %1858 = sbr.rel (0) target = $region109
    $region108: #{a3c_conv_forward.1} parent=1 // pred_region
      _
    $region109: #{a3c_conv_forward.1} parent=1 // pred_fallthru
      _
    // Predicated region
    $region110: #{a3c_conv_forward.1} parent=1 // pred_check
      _
    $region111: #{a3c_conv_forward.1} parent=1 // pred_check_branch
      %1860 = sbr.rel (0) target = $region113
    $region112: #{a3c_conv_forward.1} parent=1 // pred_region
      _
    $region113: #{a3c_conv_forward.1} parent=1 // pred_fallthru
      _
    %1861 = vsyncpa [#allocation3], 1
    %1862 = vsyncpa [#allocation5], 1
    %1863 = vsyncpa [#allocation8], 1
    %1864 = vsyncpa [#allocation11], 1
    %1865 = vsyncpa [#allocation14], 1
    %1866 = vsyncpa [#allocation17], 1

</llo_original>
